<compile_context>
chip_gen: v5e
topology: v5e:2x2
jax: 0.10.0
libtpu: 0.0.40
codegen_flags: <defaults>
</compile_context>

<pallas_src>
import jax
import jax.numpy as jnp
from jax import lax
from jax.experimental import pallas as pl
from jax.experimental.pallas import tpu as pltpu


# ------------------------------ fused kernel --------------------------------

def _lenet_fused_kernel(xe_ref, xo_ref, w1_ref, b1_ref, w2_ref, b2_ref,
                        wf1_ref, bf1_ref, wf2_ref, bf2_ref, out_ref):
    BT = xe_ref.shape[1]                 # batch tile (multiple of 8)
    f32 = jnp.float32

    xe = xe_ref[...]                     # (14, BT, 28): even image rows
    xo = xo_ref[...]                     # (14, BT, 28): odd image rows

    # ---- conv1 (1 -> 10, k=5) as 20 accumulating MXU matmuls ---------------
    # Each accumulator holds the conv output at one 2x2 pool-window position:
    # rows = py*BT + b (py in 0..11), lanes = px*10 + c (120 live lanes).
    acc = [[None, None], [None, None]]   # [row parity po][col parity pe]
    for po in range(2):
        for ky in range(5):
            iy0 = po + ky                # absolute input row for py == 0
            src = xe if iy0 % 2 == 0 else xo
            m = iy0 // 2
            lhs = src[m:m + 12].reshape(12 * BT, 28)   # contiguous slice
            for pe in range(2):
                d = jnp.dot(lhs, w1_ref[ky, pe], preferred_element_type=f32)
                acc[po][pe] = d if acc[po][pe] is None else acc[po][pe] + d

    # ---- 2x2 max-pool + bias + ReLU: pure element-wise VPU work ------------
    a1 = jnp.maximum(
        jnp.maximum(jnp.maximum(acc[0][0], acc[0][1]),
                    jnp.maximum(acc[1][0], acc[1][1])) + b1_ref[...],
        0.0)                                            # (12*BT, 120)

    # ---- conv2 (10 -> 20, k=5) as 10 accumulating MXU matmuls --------------
    # TODO(synk): F.dropout2d defaults to training=True (stochastic channel
    # drop, p=0.5); implemented here as identity (inference semantics).
    ue = uo = None                       # output split by ox2 parity
    for ky2 in range(5):
        lhs2 = a1[ky2 * BT:(ky2 + 8) * BT, :]           # 8-aligned slice
        de = jnp.dot(lhs2, w2_ref[ky2, 0], preferred_element_type=f32)
        do = jnp.dot(lhs2, w2_ref[ky2, 1], preferred_element_type=f32)
        ue = de if ue is None else ue + de
        uo = do if uo is None else uo + do              # (8*BT, 80) each

    # ---- 2x2 max-pool + bias + ReLU, fused with fc1 (4 matmuls over h) -----
    hacc = None
    for h in range(4):
        r0, r1 = 2 * h * BT, (2 * h + 1) * BT
        m2 = jnp.maximum(jnp.maximum(ue[r0:r0 + BT], ue[r1:r1 + BT]),
                         jnp.maximum(uo[r0:r0 + BT], uo[r1:r1 + BT]))
        a2h = jnp.maximum(m2 + b2_ref[...], 0.0)        # (BT, 80)
        d = jnp.dot(a2h, wf1_ref[h], preferred_element_type=f32)
        hacc = d if hacc is None else hacc + d
    h1 = jnp.maximum(hacc + bf1_ref[...], 0.0)          # (BT, 50)

    # ---- fc2 + softmax (exact normalization) -------------------------------
    logits = jnp.dot(h1, wf2_ref[...],
                     preferred_element_type=f32) + bf2_ref[...]   # (BT, 10)
    mx = jnp.max(logits, axis=1, keepdims=True)
    e = jnp.exp(logits - mx)
    out_ref[...] = (e / jnp.sum(e, axis=1, keepdims=True)).astype(out_ref.dtype)


# ------------------------------ host wrapper ---------------------------------

def _batch_tiling(n):
    # Tiles are multiples of 8 sublanes; aim for >= 4 grid steps at large
    # batch (amortize per-step pipeline overhead, allow 2-TC sharding on v7x)
    # with a 64-row cap that keeps per-step VMEM a few MB on every generation.
    bt = min(64, max(8, ((n // 4) // 8) * 8))
    n_pad = ((n + bt - 1) // bt) * bt
    return bt, n_pad


def net_forward(kp, x):
    # x: (N, 1, 28, 28) float32; kp: kernel-layout params from prep_params().
    n = x.shape[0]
    bt, n_pad = _batch_tiling(n)
    x2 = x.reshape(n, 28, 28)
    if n_pad != n:
        x2 = jnp.pad(x2, ((0, n_pad - n), (0, 0), (0, 0)))
    # Wrapper-side layout plumbing (cheap XLA ops on the raw 3 KB/image input):
    # split image rows by parity and lay them out (row, batch, col) so every
    # in-kernel slice is a contiguous / 8-aligned sublane slice.
    xe = jnp.transpose(x2[:, 0::2, :], (1, 0, 2))       # (14, n_pad, 28)
    xo = jnp.transpose(x2[:, 1::2, :], (1, 0, 2))       # (14, n_pad, 28)

    out = pl.pallas_call(
        _lenet_fused_kernel,
        out_shape=jax.ShapeDtypeStruct((n_pad, 10), jnp.float32),
        grid=(n_pad // bt,),
        in_specs=[
            pl.BlockSpec((14, bt, 28), lambda i: (0, i, 0)),       # xe tile
            pl.BlockSpec((14, bt, 28), lambda i: (0, i, 0)),       # xo tile
            pl.BlockSpec((5, 2, 28, 120), lambda i: (0, 0, 0, 0)),  # conv1 w
            pl.BlockSpec((1, 120), lambda i: (0, 0)),               # conv1 b
            pl.BlockSpec((5, 2, 120, 80), lambda i: (0, 0, 0, 0)),  # conv2 w
            pl.BlockSpec((1, 80), lambda i: (0, 0)),                # conv2 b
            pl.BlockSpec((4, 80, 50), lambda i: (0, 0, 0)),         # fc1 w
            pl.BlockSpec((1, 50), lambda i: (0, 0)),                # fc1 b
            pl.BlockSpec((50, 10), lambda i: (0, 0)),               # fc2 w
            pl.BlockSpec((1, 10), lambda i: (0, 0)),                # fc2 b
        ],
        out_specs=pl.BlockSpec((bt, 10), lambda i: (i, 0)),
        compiler_params=pltpu.CompilerParams(
            dimension_semantics=("parallel",),
            vmem_limit_bytes=32 * 1024 * 1024),
    )(xe, xo, kp["w1"], kp["b1"], kp["w2"], kp["b2"],
      kp["wf1"], kp["bf1"], kp["wf2"], kp["bf2"])
    return out[:n]


# ------------------------------ params ---------------------------------------

def init_params(key):
    # PyTorch-default-style uniform(-1/sqrt(fan_in), 1/sqrt(fan_in)) init,
    # in PyTorch layouts.
    ks = jax.random.split(key, 8)

    def u(k, shape, fan_in):
        bound = 1.0 / jnp.sqrt(jnp.float32(fan_in))
        return jax.random.uniform(k, shape, jnp.float32, -bound, bound)

    return dict(
        w_conv1=u(ks[0], (10, 1, 5, 5), 25),
        b_conv1=u(ks[1], (10,), 25),
        w_conv2=u(ks[2], (20, 10, 5, 5), 250),
        b_conv2=u(ks[3], (20,), 250),
        w_fc1=u(ks[4], (50, 320), 320),
        b_fc1=u(ks[5], (50,), 320),
        w_fc2=u(ks[6], (10, 50), 50),
        b_fc2=u(ks[7], (10,), 50),
    )


def prep_params(params):
    """One-time re-layout of PyTorch weights into the kernel's Toeplitz form."""
    # conv1 -> (5 ky, 2 col-parity, 28 input cols, 12 px * 10 c):
    #   W1[ky, pe, ix, px*10+c] = w_conv1[c, 0, ky, ix - (2*px+pe)]  (0<=kx<5)
    w1t = jnp.transpose(params["w_conv1"][:, 0], (1, 2, 0))     # (ky, kx, c)
    W1 = jnp.zeros((5, 2, 28, 12, 10), jnp.float32)
    for px in range(12):
        for pe in range(2):
            ox = 2 * px + pe
            W1 = W1.at[:, pe, ox:ox + 5, px, :].set(w1t)
    W1 = W1.reshape(5, 2, 28, 120)

    # conv2 -> (5 ky2, 2 col-parity, 12 px * 10 c, 4 ex * 20 c2):
    #   W2[ky2, pe, px*10+c, ex*20+c2] = w_conv2[c2, c, ky2, px - (2*ex+pe)]
    w2t = jnp.transpose(params["w_conv2"], (2, 1, 3, 0))        # (ky2, c, kx2, c2)
    W2 = jnp.zeros((5, 2, 12, 10, 4, 20), jnp.float32)
    for ex in range(4):
        for pe in range(2):
            ox2 = 2 * ex + pe
            for kx2 in range(5):
                W2 = W2.at[:, pe, ox2 + kx2, :, ex, :].set(w2t[:, :, kx2, :])
    W2 = W2.reshape(5, 2, 120, 80)

    # fc1 -> (4 h, 4 w * 20 c2, 50): matches PyTorch's NCHW x.view(-1, 320).
    WF1 = jnp.transpose(params["w_fc1"].reshape(50, 20, 4, 4),
                        (2, 3, 1, 0)).reshape(4, 80, 50)

    return dict(
        w1=W1, b1=jnp.tile(params["b_conv1"], 12).reshape(1, 120),
        w2=W2, b2=jnp.tile(params["b_conv2"], 4).reshape(1, 80),
        wf1=WF1, bf1=params["b_fc1"].reshape(1, 50),
        wf2=params["w_fc2"].T, bf2=params["b_fc2"].reshape(1, 10),
    )


# ------------------------------ pure-JAX reference ---------------------------

def ref_forward(params, x):
    y = lax.conv_general_dilated(x, params["w_conv1"], (1, 1), "VALID",
                                 dimension_numbers=("NCHW", "OIHW", "NCHW"))
    y = y + params["b_conv1"][None, :, None, None]
    y = lax.reduce_window(y, -jnp.inf, lax.max, (1, 1, 2, 2), (1, 1, 2, 2), "VALID")
    y = jax.nn.relu(y)
    y = lax.conv_general_dilated(y, params["w_conv2"], (1, 1), "VALID",
                                 dimension_numbers=("NCHW", "OIHW", "NCHW"))
    y = y + params["b_conv2"][None, :, None, None]
    y = lax.reduce_window(y, -jnp.inf, lax.max, (1, 1, 2, 2), (1, 1, 2, 2), "VALID")
    y = jax.nn.relu(y)
    f = y.reshape(y.shape[0], 320)
    h = jax.nn.relu(f @ params["w_fc1"].T + params["b_fc1"])
    logits = h @ params["w_fc2"].T + params["b_fc2"]
    return jax.nn.softmax(logits, axis=1)


# ------------------------------ main ------------------------------------------

if __name__ == "__main__":
    key = jax.random.PRNGKey(0)
    k_params, k_x = jax.random.split(key)
    params = init_params(k_params)
    kparams = prep_params(params)          # one-time weight prep

    x = jax.random.normal(k_x, (2, 1, 28, 28), dtype=jnp.float32)

    out = jax.jit(net_forward)(kparams, x)
    out = jax.block_until_ready(out)

    assert out.shape == (2, 10)
    # softmax rows sum to 1 (exact normalization)
    assert jnp.allclose(jnp.sum(out, axis=1), 1.0, atol=1e-4)

    ref = jax.block_until_ready(ref_forward(params, x))
    assert jnp.allclose(out, ref, atol=5e-3, rtol=5e-3)

    print("KERNEL_OK")
</pallas_src>

<mosaic_0001>
module attributes {stable_mosaic.version = 11 : i64} {
  func.func @_lenet_fused_kernel(%arg0: i32, %arg1: memref<14x8x28xf32, #tpu.memory_space<vmem>>, %arg2: memref<14x8x28xf32, #tpu.memory_space<vmem>>, %arg3: memref<5x2x28x120xf32, #tpu.memory_space<vmem>>, %arg4: memref<1x120xf32, #tpu.memory_space<vmem>>, %arg5: memref<5x2x120x80xf32, #tpu.memory_space<vmem>>, %arg6: memref<1x80xf32, #tpu.memory_space<vmem>>, %arg7: memref<4x80x50xf32, #tpu.memory_space<vmem>>, %arg8: memref<1x50xf32, #tpu.memory_space<vmem>>, %arg9: memref<50x10xf32, #tpu.memory_space<vmem>>, %arg10: memref<1x10xf32, #tpu.memory_space<vmem>>, %arg11: memref<8x10xf32, #tpu.memory_space<vmem>>) attributes {dimension_semantics = [#tpu.dimension_semantics<parallel>], iteration_bounds = array<i64: 1>, scalar_prefetch = 0 : i64, scratch_operands = 0 : i64, tpu.core_type = #tpu.core_type<tc>, window_params = [{transform_indices = @transform_0, window_bounds = array<i64: 14, 8, 28>}, {transform_indices = @transform_1, window_bounds = array<i64: 14, 8, 28>}, {pipeline_mode = #tpu.pipeline_mode<synchronous>, transform_indices = @transform_2, window_bounds = array<i64: 5, 2, 28, 120>}, {pipeline_mode = #tpu.pipeline_mode<synchronous>, transform_indices = @transform_3, window_bounds = array<i64: 1, 120>}, {pipeline_mode = #tpu.pipeline_mode<synchronous>, transform_indices = @transform_4, window_bounds = array<i64: 5, 2, 120, 80>}, {pipeline_mode = #tpu.pipeline_mode<synchronous>, transform_indices = @transform_5, window_bounds = array<i64: 1, 80>}, {pipeline_mode = #tpu.pipeline_mode<synchronous>, transform_indices = @transform_6, window_bounds = array<i64: 4, 80, 50>}, {pipeline_mode = #tpu.pipeline_mode<synchronous>, transform_indices = @transform_7, window_bounds = array<i64: 1, 50>}, {pipeline_mode = #tpu.pipeline_mode<synchronous>, transform_indices = @transform_8, window_bounds = array<i64: 50, 10>}, {pipeline_mode = #tpu.pipeline_mode<synchronous>, transform_indices = @transform_9, window_bounds = array<i64: 1, 10>}, {transform_indices = @transform_10, window_bounds = array<i64: 8, 10>}]} {
    %c0 = arith.constant 0 : index
    %c0_0 = arith.constant 0 : index
    %c0_1 = arith.constant 0 : index
    %0 = vector.load %arg1[%c0, %c0_0, %c0_1] : memref<14x8x28xf32, #tpu.memory_space<vmem>>, vector<14x8x28xf32>
    %c0_2 = arith.constant 0 : index
    %c0_3 = arith.constant 0 : index
    %c0_4 = arith.constant 0 : index
    %1 = vector.load %arg2[%c0_2, %c0_3, %c0_4] : memref<14x8x28xf32, #tpu.memory_space<vmem>>, vector<14x8x28xf32>
    %2 = vector.extract_strided_slice %0 {offsets = [0, 0, 0], sizes = [12, 8, 28], strides = [1, 1, 1]} : vector<14x8x28xf32> to vector<12x8x28xf32>
    %3 = vector.shape_cast %2 : vector<12x8x28xf32> to vector<96x28xf32>
    %c0_5 = arith.constant 0 : index
    %c0_6 = arith.constant 0 : index
    %c0_7 = arith.constant 0 : index
    %c0_8 = arith.constant 0 : index
    %4 = vector.load %arg3[%c0_5, %c0_6, %c0_7, %c0_8] : memref<5x2x28x120xf32, #tpu.memory_space<vmem>>, vector<1x1x28x120xf32>
    %5 = vector.shape_cast %4 : vector<1x1x28x120xf32> to vector<28x120xf32>
    %cst = arith.constant dense<0.000000e+00> : vector<96x120xf32>
    %6 = tpu.matmul %3, %5, %cst {dimension_numbers = #tpu.dot_dimension_numbers<[1], [0], [0], [1], [0, 0, 1, 1], [], []>} : vector<96x28xf32>, vector<28x120xf32>, vector<96x120xf32> -> vector<96x120xf32>
    %c0_9 = arith.constant 0 : index
    %c1 = arith.constant 1 : index
    %c0_10 = arith.constant 0 : index
    %c0_11 = arith.constant 0 : index
    %7 = vector.load %arg3[%c0_9, %c1, %c0_10, %c0_11] : memref<5x2x28x120xf32, #tpu.memory_space<vmem>>, vector<1x1x28x120xf32>
    %8 = vector.shape_cast %7 : vector<1x1x28x120xf32> to vector<28x120xf32>
    %cst_12 = arith.constant dense<0.000000e+00> : vector<96x120xf32>
    %9 = tpu.matmul %3, %8, %cst_12 {dimension_numbers = #tpu.dot_dimension_numbers<[1], [0], [0], [1], [0, 0, 1, 1], [], []>} : vector<96x28xf32>, vector<28x120xf32>, vector<96x120xf32> -> vector<96x120xf32>
    %10 = vector.extract_strided_slice %1 {offsets = [0, 0, 0], sizes = [12, 8, 28], strides = [1, 1, 1]} : vector<14x8x28xf32> to vector<12x8x28xf32>
    %11 = vector.shape_cast %10 : vector<12x8x28xf32> to vector<96x28xf32>
    %c1_13 = arith.constant 1 : index
    %c0_14 = arith.constant 0 : index
    %c0_15 = arith.constant 0 : index
    %c0_16 = arith.constant 0 : index
    %12 = vector.load %arg3[%c1_13, %c0_14, %c0_15, %c0_16] : memref<5x2x28x120xf32, #tpu.memory_space<vmem>>, vector<1x1x28x120xf32>
    %13 = vector.shape_cast %12 : vector<1x1x28x120xf32> to vector<28x120xf32>
    %cst_17 = arith.constant dense<0.000000e+00> : vector<96x120xf32>
    %14 = tpu.matmul %11, %13, %cst_17 {dimension_numbers = #tpu.dot_dimension_numbers<[1], [0], [0], [1], [0, 0, 1, 1], [], []>} : vector<96x28xf32>, vector<28x120xf32>, vector<96x120xf32> -> vector<96x120xf32>
    %15 = arith.addf %6, %14 : vector<96x120xf32>
    %c1_18 = arith.constant 1 : index
    %c1_19 = arith.constant 1 : index
    %c0_20 = arith.constant 0 : index
    %c0_21 = arith.constant 0 : index
    %16 = vector.load %arg3[%c1_18, %c1_19, %c0_20, %c0_21] : memref<5x2x28x120xf32, #tpu.memory_space<vmem>>, vector<1x1x28x120xf32>
    %17 = vector.shape_cast %16 : vector<1x1x28x120xf32> to vector<28x120xf32>
    %cst_22 = arith.constant dense<0.000000e+00> : vector<96x120xf32>
    %18 = tpu.matmul %11, %17, %cst_22 {dimension_numbers = #tpu.dot_dimension_numbers<[1], [0], [0], [1], [0, 0, 1, 1], [], []>} : vector<96x28xf32>, vector<28x120xf32>, vector<96x120xf32> -> vector<96x120xf32>
    %19 = arith.addf %9, %18 : vector<96x120xf32>
    %20 = vector.extract_strided_slice %0 {offsets = [1, 0, 0], sizes = [12, 8, 28], strides = [1, 1, 1]} : vector<14x8x28xf32> to vector<12x8x28xf32>
    %21 = vector.shape_cast %20 : vector<12x8x28xf32> to vector<96x28xf32>
    %c2 = arith.constant 2 : index
    %c0_23 = arith.constant 0 : index
    %c0_24 = arith.constant 0 : index
    %c0_25 = arith.constant 0 : index
    %22 = vector.load %arg3[%c2, %c0_23, %c0_24, %c0_25] : memref<5x2x28x120xf32, #tpu.memory_space<vmem>>, vector<1x1x28x120xf32>
    %23 = vector.shape_cast %22 : vector<1x1x28x120xf32> to vector<28x120xf32>
    %cst_26 = arith.constant dense<0.000000e+00> : vector<96x120xf32>
    %24 = tpu.matmul %21, %23, %cst_26 {dimension_numbers = #tpu.dot_dimension_numbers<[1], [0], [0], [1], [0, 0, 1, 1], [], []>} : vector<96x28xf32>, vector<28x120xf32>, vector<96x120xf32> -> vector<96x120xf32>
    %25 = arith.addf %15, %24 : vector<96x120xf32>
    %c2_27 = arith.constant 2 : index
    %c1_28 = arith.constant 1 : index
    %c0_29 = arith.constant 0 : index
    %c0_30 = arith.constant 0 : index
    %26 = vector.load %arg3[%c2_27, %c1_28, %c0_29, %c0_30] : memref<5x2x28x120xf32, #tpu.memory_space<vmem>>, vector<1x1x28x120xf32>
    %27 = vector.shape_cast %26 : vector<1x1x28x120xf32> to vector<28x120xf32>
    %cst_31 = arith.constant dense<0.000000e+00> : vector<96x120xf32>
    %28 = tpu.matmul %21, %27, %cst_31 {dimension_numbers = #tpu.dot_dimension_numbers<[1], [0], [0], [1], [0, 0, 1, 1], [], []>} : vector<96x28xf32>, vector<28x120xf32>, vector<96x120xf32> -> vector<96x120xf32>
    %29 = arith.addf %19, %28 : vector<96x120xf32>
    %30 = vector.extract_strided_slice %1 {offsets = [1, 0, 0], sizes = [12, 8, 28], strides = [1, 1, 1]} : vector<14x8x28xf32> to vector<12x8x28xf32>
    %31 = vector.shape_cast %30 : vector<12x8x28xf32> to vector<96x28xf32>
    %c3 = arith.constant 3 : index
    %c0_32 = arith.constant 0 : index
    %c0_33 = arith.constant 0 : index
    %c0_34 = arith.constant 0 : index
    %32 = vector.load %arg3[%c3, %c0_32, %c0_33, %c0_34] : memref<5x2x28x120xf32, #tpu.memory_space<vmem>>, vector<1x1x28x120xf32>
    %33 = vector.shape_cast %32 : vector<1x1x28x120xf32> to vector<28x120xf32>
    %cst_35 = arith.constant dense<0.000000e+00> : vector<96x120xf32>
    %34 = tpu.matmul %31, %33, %cst_35 {dimension_numbers = #tpu.dot_dimension_numbers<[1], [0], [0], [1], [0, 0, 1, 1], [], []>} : vector<96x28xf32>, vector<28x120xf32>, vector<96x120xf32> -> vector<96x120xf32>
    %35 = arith.addf %25, %34 : vector<96x120xf32>
    %c3_36 = arith.constant 3 : index
    %c1_37 = arith.constant 1 : index
    %c0_38 = arith.constant 0 : index
    %c0_39 = arith.constant 0 : index
    %36 = vector.load %arg3[%c3_36, %c1_37, %c0_38, %c0_39] : memref<5x2x28x120xf32, #tpu.memory_space<vmem>>, vector<1x1x28x120xf32>
    %37 = vector.shape_cast %36 : vector<1x1x28x120xf32> to vector<28x120xf32>
    %cst_40 = arith.constant dense<0.000000e+00> : vector<96x120xf32>
    %38 = tpu.matmul %31, %37, %cst_40 {dimension_numbers = #tpu.dot_dimension_numbers<[1], [0], [0], [1], [0, 0, 1, 1], [], []>} : vector<96x28xf32>, vector<28x120xf32>, vector<96x120xf32> -> vector<96x120xf32>
    %39 = arith.addf %29, %38 : vector<96x120xf32>
    %40 = vector.extract_strided_slice %0 {offsets = [2, 0, 0], sizes = [12, 8, 28], strides = [1, 1, 1]} : vector<14x8x28xf32> to vector<12x8x28xf32>
    %41 = vector.shape_cast %40 : vector<12x8x28xf32> to vector<96x28xf32>
    %c4 = arith.constant 4 : index
    %c0_41 = arith.constant 0 : index
    %c0_42 = arith.constant 0 : index
    %c0_43 = arith.constant 0 : index
    %42 = vector.load %arg3[%c4, %c0_41, %c0_42, %c0_43] : memref<5x2x28x120xf32, #tpu.memory_space<vmem>>, vector<1x1x28x120xf32>
    %43 = vector.shape_cast %42 : vector<1x1x28x120xf32> to vector<28x120xf32>
    %cst_44 = arith.constant dense<0.000000e+00> : vector<96x120xf32>
    %44 = tpu.matmul %41, %43, %cst_44 {dimension_numbers = #tpu.dot_dimension_numbers<[1], [0], [0], [1], [0, 0, 1, 1], [], []>} : vector<96x28xf32>, vector<28x120xf32>, vector<96x120xf32> -> vector<96x120xf32>
    %45 = arith.addf %35, %44 : vector<96x120xf32>
    %c4_45 = arith.constant 4 : index
    %c1_46 = arith.constant 1 : index
    %c0_47 = arith.constant 0 : index
    %c0_48 = arith.constant 0 : index
    %46 = vector.load %arg3[%c4_45, %c1_46, %c0_47, %c0_48] : memref<5x2x28x120xf32, #tpu.memory_space<vmem>>, vector<1x1x28x120xf32>
    %47 = vector.shape_cast %46 : vector<1x1x28x120xf32> to vector<28x120xf32>
    %cst_49 = arith.constant dense<0.000000e+00> : vector<96x120xf32>
    %48 = tpu.matmul %41, %47, %cst_49 {dimension_numbers = #tpu.dot_dimension_numbers<[1], [0], [0], [1], [0, 0, 1, 1], [], []>} : vector<96x28xf32>, vector<28x120xf32>, vector<96x120xf32> -> vector<96x120xf32>
    %49 = arith.addf %39, %48 : vector<96x120xf32>
    %50 = vector.extract_strided_slice %1 {offsets = [0, 0, 0], sizes = [12, 8, 28], strides = [1, 1, 1]} : vector<14x8x28xf32> to vector<12x8x28xf32>
    %51 = vector.shape_cast %50 : vector<12x8x28xf32> to vector<96x28xf32>
    %c0_50 = arith.constant 0 : index
    %c0_51 = arith.constant 0 : index
    %c0_52 = arith.constant 0 : index
    %c0_53 = arith.constant 0 : index
    %52 = vector.load %arg3[%c0_50, %c0_51, %c0_52, %c0_53] : memref<5x2x28x120xf32, #tpu.memory_space<vmem>>, vector<1x1x28x120xf32>
    %53 = vector.shape_cast %52 : vector<1x1x28x120xf32> to vector<28x120xf32>
    %cst_54 = arith.constant dense<0.000000e+00> : vector<96x120xf32>
    %54 = tpu.matmul %51, %53, %cst_54 {dimension_numbers = #tpu.dot_dimension_numbers<[1], [0], [0], [1], [0, 0, 1, 1], [], []>} : vector<96x28xf32>, vector<28x120xf32>, vector<96x120xf32> -> vector<96x120xf32>
    %c0_55 = arith.constant 0 : index
    %c1_56 = arith.constant 1 : index
    %c0_57 = arith.constant 0 : index
    %c0_58 = arith.constant 0 : index
    %55 = vector.load %arg3[%c0_55, %c1_56, %c0_57, %c0_58] : memref<5x2x28x120xf32, #tpu.memory_space<vmem>>, vector<1x1x28x120xf32>
    %56 = vector.shape_cast %55 : vector<1x1x28x120xf32> to vector<28x120xf32>
    %cst_59 = arith.constant dense<0.000000e+00> : vector<96x120xf32>
    %57 = tpu.matmul %51, %56, %cst_59 {dimension_numbers = #tpu.dot_dimension_numbers<[1], [0], [0], [1], [0, 0, 1, 1], [], []>} : vector<96x28xf32>, vector<28x120xf32>, vector<96x120xf32> -> vector<96x120xf32>
    %58 = vector.extract_strided_slice %0 {offsets = [1, 0, 0], sizes = [12, 8, 28], strides = [1, 1, 1]} : vector<14x8x28xf32> to vector<12x8x28xf32>
    %59 = vector.shape_cast %58 : vector<12x8x28xf32> to vector<96x28xf32>
    %c1_60 = arith.constant 1 : index
    %c0_61 = arith.constant 0 : index
    %c0_62 = arith.constant 0 : index
    %c0_63 = arith.constant 0 : index
    %60 = vector.load %arg3[%c1_60, %c0_61, %c0_62, %c0_63] : memref<5x2x28x120xf32, #tpu.memory_space<vmem>>, vector<1x1x28x120xf32>
    %61 = vector.shape_cast %60 : vector<1x1x28x120xf32> to vector<28x120xf32>
    %cst_64 = arith.constant dense<0.000000e+00> : vector<96x120xf32>
    %62 = tpu.matmul %59, %61, %cst_64 {dimension_numbers = #tpu.dot_dimension_numbers<[1], [0], [0], [1], [0, 0, 1, 1], [], []>} : vector<96x28xf32>, vector<28x120xf32>, vector<96x120xf32> -> vector<96x120xf32>
    %63 = arith.addf %54, %62 : vector<96x120xf32>
    %c1_65 = arith.constant 1 : index
    %c1_66 = arith.constant 1 : index
    %c0_67 = arith.constant 0 : index
    %c0_68 = arith.constant 0 : index
    %64 = vector.load %arg3[%c1_65, %c1_66, %c0_67, %c0_68] : memref<5x2x28x120xf32, #tpu.memory_space<vmem>>, vector<1x1x28x120xf32>
    %65 = vector.shape_cast %64 : vector<1x1x28x120xf32> to vector<28x120xf32>
    %cst_69 = arith.constant dense<0.000000e+00> : vector<96x120xf32>
    %66 = tpu.matmul %59, %65, %cst_69 {dimension_numbers = #tpu.dot_dimension_numbers<[1], [0], [0], [1], [0, 0, 1, 1], [], []>} : vector<96x28xf32>, vector<28x120xf32>, vector<96x120xf32> -> vector<96x120xf32>
    %67 = arith.addf %57, %66 : vector<96x120xf32>
    %68 = vector.extract_strided_slice %1 {offsets = [1, 0, 0], sizes = [12, 8, 28], strides = [1, 1, 1]} : vector<14x8x28xf32> to vector<12x8x28xf32>
    %69 = vector.shape_cast %68 : vector<12x8x28xf32> to vector<96x28xf32>
    %c2_70 = arith.constant 2 : index
    %c0_71 = arith.constant 0 : index
    %c0_72 = arith.constant 0 : index
    %c0_73 = arith.constant 0 : index
    %70 = vector.load %arg3[%c2_70, %c0_71, %c0_72, %c0_73] : memref<5x2x28x120xf32, #tpu.memory_space<vmem>>, vector<1x1x28x120xf32>
    %71 = vector.shape_cast %70 : vector<1x1x28x120xf32> to vector<28x120xf32>
    %cst_74 = arith.constant dense<0.000000e+00> : vector<96x120xf32>
    %72 = tpu.matmul %69, %71, %cst_74 {dimension_numbers = #tpu.dot_dimension_numbers<[1], [0], [0], [1], [0, 0, 1, 1], [], []>} : vector<96x28xf32>, vector<28x120xf32>, vector<96x120xf32> -> vector<96x120xf32>
    %73 = arith.addf %63, %72 : vector<96x120xf32>
    %c2_75 = arith.constant 2 : index
    %c1_76 = arith.constant 1 : index
    %c0_77 = arith.constant 0 : index
    %c0_78 = arith.constant 0 : index
    %74 = vector.load %arg3[%c2_75, %c1_76, %c0_77, %c0_78] : memref<5x2x28x120xf32, #tpu.memory_space<vmem>>, vector<1x1x28x120xf32>
    %75 = vector.shape_cast %74 : vector<1x1x28x120xf32> to vector<28x120xf32>
    %cst_79 = arith.constant dense<0.000000e+00> : vector<96x120xf32>
    %76 = tpu.matmul %69, %75, %cst_79 {dimension_numbers = #tpu.dot_dimension_numbers<[1], [0], [0], [1], [0, 0, 1, 1], [], []>} : vector<96x28xf32>, vector<28x120xf32>, vector<96x120xf32> -> vector<96x120xf32>
    %77 = arith.addf %67, %76 : vector<96x120xf32>
    %78 = vector.extract_strided_slice %0 {offsets = [2, 0, 0], sizes = [12, 8, 28], strides = [1, 1, 1]} : vector<14x8x28xf32> to vector<12x8x28xf32>
    %79 = vector.shape_cast %78 : vector<12x8x28xf32> to vector<96x28xf32>
    %c3_80 = arith.constant 3 : index
    %c0_81 = arith.constant 0 : index
    %c0_82 = arith.constant 0 : index
    %c0_83 = arith.constant 0 : index
    %80 = vector.load %arg3[%c3_80, %c0_81, %c0_82, %c0_83] : memref<5x2x28x120xf32, #tpu.memory_space<vmem>>, vector<1x1x28x120xf32>
    %81 = vector.shape_cast %80 : vector<1x1x28x120xf32> to vector<28x120xf32>
    %cst_84 = arith.constant dense<0.000000e+00> : vector<96x120xf32>
    %82 = tpu.matmul %79, %81, %cst_84 {dimension_numbers = #tpu.dot_dimension_numbers<[1], [0], [0], [1], [0, 0, 1, 1], [], []>} : vector<96x28xf32>, vector<28x120xf32>, vector<96x120xf32> -> vector<96x120xf32>
    %83 = arith.addf %73, %82 : vector<96x120xf32>
    %c3_85 = arith.constant 3 : index
    %c1_86 = arith.constant 1 : index
    %c0_87 = arith.constant 0 : index
    %c0_88 = arith.constant 0 : index
    %84 = vector.load %arg3[%c3_85, %c1_86, %c0_87, %c0_88] : memref<5x2x28x120xf32, #tpu.memory_space<vmem>>, vector<1x1x28x120xf32>
    %85 = vector.shape_cast %84 : vector<1x1x28x120xf32> to vector<28x120xf32>
    %cst_89 = arith.constant dense<0.000000e+00> : vector<96x120xf32>
    %86 = tpu.matmul %79, %85, %cst_89 {dimension_numbers = #tpu.dot_dimension_numbers<[1], [0], [0], [1], [0, 0, 1, 1], [], []>} : vector<96x28xf32>, vector<28x120xf32>, vector<96x120xf32> -> vector<96x120xf32>
    %87 = arith.addf %77, %86 : vector<96x120xf32>
    %88 = vector.extract_strided_slice %1 {offsets = [2, 0, 0], sizes = [12, 8, 28], strides = [1, 1, 1]} : vector<14x8x28xf32> to vector<12x8x28xf32>
    %89 = vector.shape_cast %88 : vector<12x8x28xf32> to vector<96x28xf32>
    %c4_90 = arith.constant 4 : index
    %c0_91 = arith.constant 0 : index
    %c0_92 = arith.constant 0 : index
    %c0_93 = arith.constant 0 : index
    %90 = vector.load %arg3[%c4_90, %c0_91, %c0_92, %c0_93] : memref<5x2x28x120xf32, #tpu.memory_space<vmem>>, vector<1x1x28x120xf32>
    %91 = vector.shape_cast %90 : vector<1x1x28x120xf32> to vector<28x120xf32>
    %cst_94 = arith.constant dense<0.000000e+00> : vector<96x120xf32>
    %92 = tpu.matmul %89, %91, %cst_94 {dimension_numbers = #tpu.dot_dimension_numbers<[1], [0], [0], [1], [0, 0, 1, 1], [], []>} : vector<96x28xf32>, vector<28x120xf32>, vector<96x120xf32> -> vector<96x120xf32>
    %93 = arith.addf %83, %92 : vector<96x120xf32>
    %c4_95 = arith.constant 4 : index
    %c1_96 = arith.constant 1 : index
    %c0_97 = arith.constant 0 : index
    %c0_98 = arith.constant 0 : index
    %94 = vector.load %arg3[%c4_95, %c1_96, %c0_97, %c0_98] : memref<5x2x28x120xf32, #tpu.memory_space<vmem>>, vector<1x1x28x120xf32>
    %95 = vector.shape_cast %94 : vector<1x1x28x120xf32> to vector<28x120xf32>
    %cst_99 = arith.constant dense<0.000000e+00> : vector<96x120xf32>
    %96 = tpu.matmul %89, %95, %cst_99 {dimension_numbers = #tpu.dot_dimension_numbers<[1], [0], [0], [1], [0, 0, 1, 1], [], []>} : vector<96x28xf32>, vector<28x120xf32>, vector<96x120xf32> -> vector<96x120xf32>
    %97 = arith.addf %87, %96 : vector<96x120xf32>
    %98 = arith.maximumf %45, %49 : vector<96x120xf32>
    %99 = arith.maximumf %93, %97 : vector<96x120xf32>
    %100 = arith.maximumf %98, %99 : vector<96x120xf32>
    %c0_100 = arith.constant 0 : index
    %c0_101 = arith.constant 0 : index
    %101 = vector.load %arg4[%c0_100, %c0_101] : memref<1x120xf32, #tpu.memory_space<vmem>>, vector<1x120xf32>
    %102 = vector.broadcast %101 : vector<1x120xf32> to vector<96x120xf32>
    %103 = arith.addf %100, %102 : vector<96x120xf32>
    %cst_102 = arith.constant 0.000000e+00 : f32
    %104 = vector.broadcast %cst_102 : f32 to vector<96x120xf32>
    %105 = arith.maximumf %103, %104 : vector<96x120xf32>
    %106 = vector.extract_strided_slice %105 {offsets = [0, 0], sizes = [64, 120], strides = [1, 1]} : vector<96x120xf32> to vector<64x120xf32>
    %c0_103 = arith.constant 0 : index
    %c0_104 = arith.constant 0 : index
    %c0_105 = arith.constant 0 : index
    %c0_106 = arith.constant 0 : index
    %107 = vector.load %arg5[%c0_103, %c0_104, %c0_105, %c0_106] : memref<5x2x120x80xf32, #tpu.memory_space<vmem>>, vector<1x1x120x80xf32>
    %108 = vector.shape_cast %107 : vector<1x1x120x80xf32> to vector<120x80xf32>
    %cst_107 = arith.constant dense<0.000000e+00> : vector<64x80xf32>
    %109 = tpu.matmul %106, %108, %cst_107 {dimension_numbers = #tpu.dot_dimension_numbers<[1], [0], [0], [1], [0, 0, 1, 1], [], []>} : vector<64x120xf32>, vector<120x80xf32>, vector<64x80xf32> -> vector<64x80xf32>
    %c0_108 = arith.constant 0 : index
    %c1_109 = arith.constant 1 : index
    %c0_110 = arith.constant 0 : index
    %c0_111 = arith.constant 0 : index
    %110 = vector.load %arg5[%c0_108, %c1_109, %c0_110, %c0_111] : memref<5x2x120x80xf32, #tpu.memory_space<vmem>>, vector<1x1x120x80xf32>
    %111 = vector.shape_cast %110 : vector<1x1x120x80xf32> to vector<120x80xf32>
    %cst_112 = arith.constant dense<0.000000e+00> : vector<64x80xf32>
    %112 = tpu.matmul %106, %111, %cst_112 {dimension_numbers = #tpu.dot_dimension_numbers<[1], [0], [0], [1], [0, 0, 1, 1], [], []>} : vector<64x120xf32>, vector<120x80xf32>, vector<64x80xf32> -> vector<64x80xf32>
    %113 = vector.extract_strided_slice %105 {offsets = [8, 0], sizes = [64, 120], strides = [1, 1]} : vector<96x120xf32> to vector<64x120xf32>
    %c1_113 = arith.constant 1 : index
    %c0_114 = arith.constant 0 : index
    %c0_115 = arith.constant 0 : index
    %c0_116 = arith.constant 0 : index
    %114 = vector.load %arg5[%c1_113, %c0_114, %c0_115, %c0_116] : memref<5x2x120x80xf32, #tpu.memory_space<vmem>>, vector<1x1x120x80xf32>
    %115 = vector.shape_cast %114 : vector<1x1x120x80xf32> to vector<120x80xf32>
    %cst_117 = arith.constant dense<0.000000e+00> : vector<64x80xf32>
    %116 = tpu.matmul %113, %115, %cst_117 {dimension_numbers = #tpu.dot_dimension_numbers<[1], [0], [0], [1], [0, 0, 1, 1], [], []>} : vector<64x120xf32>, vector<120x80xf32>, vector<64x80xf32> -> vector<64x80xf32>
    %c1_118 = arith.constant 1 : index
    %c1_119 = arith.constant 1 : index
    %c0_120 = arith.constant 0 : index
    %c0_121 = arith.constant 0 : index
    %117 = vector.load %arg5[%c1_118, %c1_119, %c0_120, %c0_121] : memref<5x2x120x80xf32, #tpu.memory_space<vmem>>, vector<1x1x120x80xf32>
    %118 = vector.shape_cast %117 : vector<1x1x120x80xf32> to vector<120x80xf32>
    %cst_122 = arith.constant dense<0.000000e+00> : vector<64x80xf32>
    %119 = tpu.matmul %113, %118, %cst_122 {dimension_numbers = #tpu.dot_dimension_numbers<[1], [0], [0], [1], [0, 0, 1, 1], [], []>} : vector<64x120xf32>, vector<120x80xf32>, vector<64x80xf32> -> vector<64x80xf32>
    %120 = arith.addf %109, %116 : vector<64x80xf32>
    %121 = arith.addf %112, %119 : vector<64x80xf32>
    %122 = vector.extract_strided_slice %105 {offsets = [16, 0], sizes = [64, 120], strides = [1, 1]} : vector<96x120xf32> to vector<64x120xf32>
    %c2_123 = arith.constant 2 : index
    %c0_124 = arith.constant 0 : index
    %c0_125 = arith.constant 0 : index
    %c0_126 = arith.constant 0 : index
    %123 = vector.load %arg5[%c2_123, %c0_124, %c0_125, %c0_126] : memref<5x2x120x80xf32, #tpu.memory_space<vmem>>, vector<1x1x120x80xf32>
    %124 = vector.shape_cast %123 : vector<1x1x120x80xf32> to vector<120x80xf32>
    %cst_127 = arith.constant dense<0.000000e+00> : vector<64x80xf32>
    %125 = tpu.matmul %122, %124, %cst_127 {dimension_numbers = #tpu.dot_dimension_numbers<[1], [0], [0], [1], [0, 0, 1, 1], [], []>} : vector<64x120xf32>, vector<120x80xf32>, vector<64x80xf32> -> vector<64x80xf32>
    %c2_128 = arith.constant 2 : index
    %c1_129 = arith.constant 1 : index
    %c0_130 = arith.constant 0 : index
    %c0_131 = arith.constant 0 : index
    %126 = vector.load %arg5[%c2_128, %c1_129, %c0_130, %c0_131] : memref<5x2x120x80xf32, #tpu.memory_space<vmem>>, vector<1x1x120x80xf32>
    %127 = vector.shape_cast %126 : vector<1x1x120x80xf32> to vector<120x80xf32>
    %cst_132 = arith.constant dense<0.000000e+00> : vector<64x80xf32>
    %128 = tpu.matmul %122, %127, %cst_132 {dimension_numbers = #tpu.dot_dimension_numbers<[1], [0], [0], [1], [0, 0, 1, 1], [], []>} : vector<64x120xf32>, vector<120x80xf32>, vector<64x80xf32> -> vector<64x80xf32>
    %129 = arith.addf %120, %125 : vector<64x80xf32>
    %130 = arith.addf %121, %128 : vector<64x80xf32>
    %131 = vector.extract_strided_slice %105 {offsets = [24, 0], sizes = [64, 120], strides = [1, 1]} : vector<96x120xf32> to vector<64x120xf32>
    %c3_133 = arith.constant 3 : index
    %c0_134 = arith.constant 0 : index
    %c0_135 = arith.constant 0 : index
    %c0_136 = arith.constant 0 : index
    %132 = vector.load %arg5[%c3_133, %c0_134, %c0_135, %c0_136] : memref<5x2x120x80xf32, #tpu.memory_space<vmem>>, vector<1x1x120x80xf32>
    %133 = vector.shape_cast %132 : vector<1x1x120x80xf32> to vector<120x80xf32>
    %cst_137 = arith.constant dense<0.000000e+00> : vector<64x80xf32>
    %134 = tpu.matmul %131, %133, %cst_137 {dimension_numbers = #tpu.dot_dimension_numbers<[1], [0], [0], [1], [0, 0, 1, 1], [], []>} : vector<64x120xf32>, vector<120x80xf32>, vector<64x80xf32> -> vector<64x80xf32>
    %c3_138 = arith.constant 3 : index
    %c1_139 = arith.constant 1 : index
    %c0_140 = arith.constant 0 : index
    %c0_141 = arith.constant 0 : index
    %135 = vector.load %arg5[%c3_138, %c1_139, %c0_140, %c0_141] : memref<5x2x120x80xf32, #tpu.memory_space<vmem>>, vector<1x1x120x80xf32>
    %136 = vector.shape_cast %135 : vector<1x1x120x80xf32> to vector<120x80xf32>
    %cst_142 = arith.constant dense<0.000000e+00> : vector<64x80xf32>
    %137 = tpu.matmul %131, %136, %cst_142 {dimension_numbers = #tpu.dot_dimension_numbers<[1], [0], [0], [1], [0, 0, 1, 1], [], []>} : vector<64x120xf32>, vector<120x80xf32>, vector<64x80xf32> -> vector<64x80xf32>
    %138 = arith.addf %129, %134 : vector<64x80xf32>
    %139 = arith.addf %130, %137 : vector<64x80xf32>
    %140 = vector.extract_strided_slice %105 {offsets = [32, 0], sizes = [64, 120], strides = [1, 1]} : vector<96x120xf32> to vector<64x120xf32>
    %c4_143 = arith.constant 4 : index
    %c0_144 = arith.constant 0 : index
    %c0_145 = arith.constant 0 : index
    %c0_146 = arith.constant 0 : index
    %141 = vector.load %arg5[%c4_143, %c0_144, %c0_145, %c0_146] : memref<5x2x120x80xf32, #tpu.memory_space<vmem>>, vector<1x1x120x80xf32>
    %142 = vector.shape_cast %141 : vector<1x1x120x80xf32> to vector<120x80xf32>
    %cst_147 = arith.constant dense<0.000000e+00> : vector<64x80xf32>
    %143 = tpu.matmul %140, %142, %cst_147 {dimension_numbers = #tpu.dot_dimension_numbers<[1], [0], [0], [1], [0, 0, 1, 1], [], []>} : vector<64x120xf32>, vector<120x80xf32>, vector<64x80xf32> -> vector<64x80xf32>
    %c4_148 = arith.constant 4 : index
    %c1_149 = arith.constant 1 : index
    %c0_150 = arith.constant 0 : index
    %c0_151 = arith.constant 0 : index
    %144 = vector.load %arg5[%c4_148, %c1_149, %c0_150, %c0_151] : memref<5x2x120x80xf32, #tpu.memory_space<vmem>>, vector<1x1x120x80xf32>
    %145 = vector.shape_cast %144 : vector<1x1x120x80xf32> to vector<120x80xf32>
    %cst_152 = arith.constant dense<0.000000e+00> : vector<64x80xf32>
    %146 = tpu.matmul %140, %145, %cst_152 {dimension_numbers = #tpu.dot_dimension_numbers<[1], [0], [0], [1], [0, 0, 1, 1], [], []>} : vector<64x120xf32>, vector<120x80xf32>, vector<64x80xf32> -> vector<64x80xf32>
    %147 = arith.addf %138, %143 : vector<64x80xf32>
    %148 = arith.addf %139, %146 : vector<64x80xf32>
    %149 = vector.extract_strided_slice %147 {offsets = [0, 0], sizes = [8, 80], strides = [1, 1]} : vector<64x80xf32> to vector<8x80xf32>
    %150 = vector.extract_strided_slice %147 {offsets = [8, 0], sizes = [8, 80], strides = [1, 1]} : vector<64x80xf32> to vector<8x80xf32>
    %151 = arith.maximumf %149, %150 : vector<8x80xf32>
    %152 = vector.extract_strided_slice %148 {offsets = [0, 0], sizes = [8, 80], strides = [1, 1]} : vector<64x80xf32> to vector<8x80xf32>
    %153 = vector.extract_strided_slice %148 {offsets = [8, 0], sizes = [8, 80], strides = [1, 1]} : vector<64x80xf32> to vector<8x80xf32>
    %154 = arith.maximumf %152, %153 : vector<8x80xf32>
    %155 = arith.maximumf %151, %154 : vector<8x80xf32>
    %c0_153 = arith.constant 0 : index
    %c0_154 = arith.constant 0 : index
    %156 = vector.load %arg6[%c0_153, %c0_154] : memref<1x80xf32, #tpu.memory_space<vmem>>, vector<1x80xf32>
    %157 = vector.broadcast %156 : vector<1x80xf32> to vector<8x80xf32>
    %158 = arith.addf %155, %157 : vector<8x80xf32>
    %cst_155 = arith.constant 0.000000e+00 : f32
    %159 = vector.broadcast %cst_155 : f32 to vector<8x80xf32>
    %160 = arith.maximumf %158, %159 : vector<8x80xf32>
    %c0_156 = arith.constant 0 : index
    %c0_157 = arith.constant 0 : index
    %c0_158 = arith.constant 0 : index
    %161 = vector.load %arg7[%c0_156, %c0_157, %c0_158] : memref<4x80x50xf32, #tpu.memory_space<vmem>>, vector<1x80x50xf32>
    %162 = vector.shape_cast %161 : vector<1x80x50xf32> to vector<80x50xf32>
    %cst_159 = arith.constant dense<0.000000e+00> : vector<8x50xf32>
    %163 = tpu.matmul %160, %162, %cst_159 {dimension_numbers = #tpu.dot_dimension_numbers<[1], [0], [0], [1], [0, 0, 1, 1], [], []>} : vector<8x80xf32>, vector<80x50xf32>, vector<8x50xf32> -> vector<8x50xf32>
    %164 = vector.extract_strided_slice %147 {offsets = [16, 0], sizes = [8, 80], strides = [1, 1]} : vector<64x80xf32> to vector<8x80xf32>
    %165 = vector.extract_strided_slice %147 {offsets = [24, 0], sizes = [8, 80], strides = [1, 1]} : vector<64x80xf32> to vector<8x80xf32>
    %166 = arith.maximumf %164, %165 : vector<8x80xf32>
    %167 = vector.extract_strided_slice %148 {offsets = [16, 0], sizes = [8, 80], strides = [1, 1]} : vector<64x80xf32> to vector<8x80xf32>
    %168 = vector.extract_strided_slice %148 {offsets = [24, 0], sizes = [8, 80], strides = [1, 1]} : vector<64x80xf32> to vector<8x80xf32>
    %169 = arith.maximumf %167, %168 : vector<8x80xf32>
    %170 = arith.maximumf %166, %169 : vector<8x80xf32>
    %c0_160 = arith.constant 0 : index
    %c0_161 = arith.constant 0 : index
    %171 = vector.load %arg6[%c0_160, %c0_161] : memref<1x80xf32, #tpu.memory_space<vmem>>, vector<1x80xf32>
    %172 = vector.broadcast %171 : vector<1x80xf32> to vector<8x80xf32>
    %173 = arith.addf %170, %172 : vector<8x80xf32>
    %cst_162 = arith.constant 0.000000e+00 : f32
    %174 = vector.broadcast %cst_162 : f32 to vector<8x80xf32>
    %175 = arith.maximumf %173, %174 : vector<8x80xf32>
    %c1_163 = arith.constant 1 : index
    %c0_164 = arith.constant 0 : index
    %c0_165 = arith.constant 0 : index
    %176 = vector.load %arg7[%c1_163, %c0_164, %c0_165] : memref<4x80x50xf32, #tpu.memory_space<vmem>>, vector<1x80x50xf32>
    %177 = vector.shape_cast %176 : vector<1x80x50xf32> to vector<80x50xf32>
    %cst_166 = arith.constant dense<0.000000e+00> : vector<8x50xf32>
    %178 = tpu.matmul %175, %177, %cst_166 {dimension_numbers = #tpu.dot_dimension_numbers<[1], [0], [0], [1], [0, 0, 1, 1], [], []>} : vector<8x80xf32>, vector<80x50xf32>, vector<8x50xf32> -> vector<8x50xf32>
    %179 = arith.addf %163, %178 : vector<8x50xf32>
    %180 = vector.extract_strided_slice %147 {offsets = [32, 0], sizes = [8, 80], strides = [1, 1]} : vector<64x80xf32> to vector<8x80xf32>
    %181 = vector.extract_strided_slice %147 {offsets = [40, 0], sizes = [8, 80], strides = [1, 1]} : vector<64x80xf32> to vector<8x80xf32>
    %182 = arith.maximumf %180, %181 : vector<8x80xf32>
    %183 = vector.extract_strided_slice %148 {offsets = [32, 0], sizes = [8, 80], strides = [1, 1]} : vector<64x80xf32> to vector<8x80xf32>
    %184 = vector.extract_strided_slice %148 {offsets = [40, 0], sizes = [8, 80], strides = [1, 1]} : vector<64x80xf32> to vector<8x80xf32>
    %185 = arith.maximumf %183, %184 : vector<8x80xf32>
    %186 = arith.maximumf %182, %185 : vector<8x80xf32>
    %c0_167 = arith.constant 0 : index
    %c0_168 = arith.constant 0 : index
    %187 = vector.load %arg6[%c0_167, %c0_168] : memref<1x80xf32, #tpu.memory_space<vmem>>, vector<1x80xf32>
    %188 = vector.broadcast %187 : vector<1x80xf32> to vector<8x80xf32>
    %189 = arith.addf %186, %188 : vector<8x80xf32>
    %cst_169 = arith.constant 0.000000e+00 : f32
    %190 = vector.broadcast %cst_169 : f32 to vector<8x80xf32>
    %191 = arith.maximumf %189, %190 : vector<8x80xf32>
    %c2_170 = arith.constant 2 : index
    %c0_171 = arith.constant 0 : index
    %c0_172 = arith.constant 0 : index
    %192 = vector.load %arg7[%c2_170, %c0_171, %c0_172] : memref<4x80x50xf32, #tpu.memory_space<vmem>>, vector<1x80x50xf32>
    %193 = vector.shape_cast %192 : vector<1x80x50xf32> to vector<80x50xf32>
    %cst_173 = arith.constant dense<0.000000e+00> : vector<8x50xf32>
    %194 = tpu.matmul %191, %193, %cst_173 {dimension_numbers = #tpu.dot_dimension_numbers<[1], [0], [0], [1], [0, 0, 1, 1], [], []>} : vector<8x80xf32>, vector<80x50xf32>, vector<8x50xf32> -> vector<8x50xf32>
    %195 = arith.addf %179, %194 : vector<8x50xf32>
    %196 = vector.extract_strided_slice %147 {offsets = [48, 0], sizes = [8, 80], strides = [1, 1]} : vector<64x80xf32> to vector<8x80xf32>
    %197 = vector.extract_strided_slice %147 {offsets = [56, 0], sizes = [8, 80], strides = [1, 1]} : vector<64x80xf32> to vector<8x80xf32>
    %198 = arith.maximumf %196, %197 : vector<8x80xf32>
    %199 = vector.extract_strided_slice %148 {offsets = [48, 0], sizes = [8, 80], strides = [1, 1]} : vector<64x80xf32> to vector<8x80xf32>
    %200 = vector.extract_strided_slice %148 {offsets = [56, 0], sizes = [8, 80], strides = [1, 1]} : vector<64x80xf32> to vector<8x80xf32>
    %201 = arith.maximumf %199, %200 : vector<8x80xf32>
    %202 = arith.maximumf %198, %201 : vector<8x80xf32>
    %c0_174 = arith.constant 0 : index
    %c0_175 = arith.constant 0 : index
    %203 = vector.load %arg6[%c0_174, %c0_175] : memref<1x80xf32, #tpu.memory_space<vmem>>, vector<1x80xf32>
    %204 = vector.broadcast %203 : vector<1x80xf32> to vector<8x80xf32>
    %205 = arith.addf %202, %204 : vector<8x80xf32>
    %cst_176 = arith.constant 0.000000e+00 : f32
    %206 = vector.broadcast %cst_176 : f32 to vector<8x80xf32>
    %207 = arith.maximumf %205, %206 : vector<8x80xf32>
    %c3_177 = arith.constant 3 : index
    %c0_178 = arith.constant 0 : index
    %c0_179 = arith.constant 0 : index
    %208 = vector.load %arg7[%c3_177, %c0_178, %c0_179] : memref<4x80x50xf32, #tpu.memory_space<vmem>>, vector<1x80x50xf32>
    %209 = vector.shape_cast %208 : vector<1x80x50xf32> to vector<80x50xf32>
    %cst_180 = arith.constant dense<0.000000e+00> : vector<8x50xf32>
    %210 = tpu.matmul %207, %209, %cst_180 {dimension_numbers = #tpu.dot_dimension_numbers<[1], [0], [0], [1], [0, 0, 1, 1], [], []>} : vector<8x80xf32>, vector<80x50xf32>, vector<8x50xf32> -> vector<8x50xf32>
    %211 = arith.addf %195, %210 : vector<8x50xf32>
    %c0_181 = arith.constant 0 : index
    %c0_182 = arith.constant 0 : index
    %212 = vector.load %arg8[%c0_181, %c0_182] : memref<1x50xf32, #tpu.memory_space<vmem>>, vector<1x50xf32>
    %213 = vector.broadcast %212 : vector<1x50xf32> to vector<8x50xf32>
    %214 = arith.addf %211, %213 : vector<8x50xf32>
    %cst_183 = arith.constant 0.000000e+00 : f32
    %215 = vector.broadcast %cst_183 : f32 to vector<8x50xf32>
    %216 = arith.maximumf %214, %215 : vector<8x50xf32>
    %c0_184 = arith.constant 0 : index
    %c0_185 = arith.constant 0 : index
    %217 = vector.load %arg9[%c0_184, %c0_185] : memref<50x10xf32, #tpu.memory_space<vmem>>, vector<50x10xf32>
    %cst_186 = arith.constant dense<0.000000e+00> : vector<8x10xf32>
    %218 = tpu.matmul %216, %217, %cst_186 {dimension_numbers = #tpu.dot_dimension_numbers<[1], [0], [0], [1], [0, 0, 1, 1], [], []>} : vector<8x50xf32>, vector<50x10xf32>, vector<8x10xf32> -> vector<8x10xf32>
    %c0_187 = arith.constant 0 : index
    %c0_188 = arith.constant 0 : index
    %219 = vector.load %arg10[%c0_187, %c0_188] : memref<1x10xf32, #tpu.memory_space<vmem>>, vector<1x10xf32>
    %220 = vector.broadcast %219 : vector<1x10xf32> to vector<8x10xf32>
    %221 = arith.addf %218, %220 : vector<8x10xf32>
    %cst_189 = arith.constant dense<0xFF800000> : vector<8xf32>
    %222 = vector.multi_reduction <maximumf>, %221, %cst_189 [1] : vector<8x10xf32> to vector<8xf32>
    %223 = vector.shape_cast %222 : vector<8xf32> to vector<8x1xf32>
    %224 = vector.broadcast %223 : vector<8x1xf32> to vector<8x10xf32>
    %225 = arith.subf %221, %224 : vector<8x10xf32>
    %226 = math.exp %225 : vector<8x10xf32>
    %cst_190 = arith.constant dense<0.000000e+00> : vector<8xf32>
    %227 = vector.multi_reduction <add>, %226, %cst_190 [1] : vector<8x10xf32> to vector<8xf32>
    %228 = vector.shape_cast %227 : vector<8xf32> to vector<8x1xf32>
    %229 = vector.broadcast %228 : vector<8x1xf32> to vector<8x10xf32>
    %230 = arith.divf %226, %229 : vector<8x10xf32>
    %c0_191 = arith.constant 0 : index
    %c0_192 = arith.constant 0 : index
    %231 = vector.load %arg11[%c0_191, %c0_192] : memref<8x10xf32, #tpu.memory_space<vmem>>, vector<8x10xf32>
    tpu.vector_store %arg11[%c0_191, %c0_192], %230 {strides = array<i32>} : memref<8x10xf32, #tpu.memory_space<vmem>>, vector<8x10xf32>,
    return
  }
  func.func @transform_0(%arg0: i32) -> (i32, i32, i32) {
    %c0_i32 = arith.constant 0 : i32
    %c0_i32_0 = arith.constant 0 : i32
    %c0_i32_1 = arith.constant 0 : i32
    return %c0_i32, %arg0, %c0_i32_0 : i32, i32, i32
  }
  func.func @transform_1(%arg0: i32) -> (i32, i32, i32) {
    %c0_i32 = arith.constant 0 : i32
    %c0_i32_0 = arith.constant 0 : i32
    %c0_i32_1 = arith.constant 0 : i32
    return %c0_i32, %arg0, %c0_i32_0 : i32, i32, i32
  }
  func.func @transform_2(%arg0: i32) -> (i32, i32, i32, i32) {
    %c0_i32 = arith.constant 0 : i32
    %c0_i32_0 = arith.constant 0 : i32
    %c0_i32_1 = arith.constant 0 : i32
    %c0_i32_2 = arith.constant 0 : i32
    %c0_i32_3 = arith.constant 0 : i32
    return %c0_i32, %c0_i32_0, %c0_i32_1, %c0_i32_2 : i32, i32, i32, i32
  }
  func.func @transform_3(%arg0: i32) -> (i32, i32) {
    %c0_i32 = arith.constant 0 : i32
    %c0_i32_0 = arith.constant 0 : i32
    %c0_i32_1 = arith.constant 0 : i32
    return %c0_i32, %c0_i32_0 : i32, i32
  }
  func.func @transform_4(%arg0: i32) -> (i32, i32, i32, i32) {
    %c0_i32 = arith.constant 0 : i32
    %c0_i32_0 = arith.constant 0 : i32
    %c0_i32_1 = arith.constant 0 : i32
    %c0_i32_2 = arith.constant 0 : i32
    %c0_i32_3 = arith.constant 0 : i32
    return %c0_i32, %c0_i32_0, %c0_i32_1, %c0_i32_2 : i32, i32, i32, i32
  }
  func.func @transform_5(%arg0: i32) -> (i32, i32) {
    %c0_i32 = arith.constant 0 : i32
    %c0_i32_0 = arith.constant 0 : i32
    %c0_i32_1 = arith.constant 0 : i32
    return %c0_i32, %c0_i32_0 : i32, i32
  }
  func.func @transform_6(%arg0: i32) -> (i32, i32, i32) {
    %c0_i32 = arith.constant 0 : i32
    %c0_i32_0 = arith.constant 0 : i32
    %c0_i32_1 = arith.constant 0 : i32
    %c0_i32_2 = arith.constant 0 : i32
    return %c0_i32, %c0_i32_0, %c0_i32_1 : i32, i32, i32
  }
  func.func @transform_7(%arg0: i32) -> (i32, i32) {
    %c0_i32 = arith.constant 0 : i32
    %c0_i32_0 = arith.constant 0 : i32
    %c0_i32_1 = arith.constant 0 : i32
    return %c0_i32, %c0_i32_0 : i32, i32
  }
  func.func @transform_8(%arg0: i32) -> (i32, i32) {
    %c0_i32 = arith.constant 0 : i32
    %c0_i32_0 = arith.constant 0 : i32
    %c0_i32_1 = arith.constant 0 : i32
    return %c0_i32, %c0_i32_0 : i32, i32
  }
  func.func @transform_9(%arg0: i32) -> (i32, i32) {
    %c0_i32 = arith.constant 0 : i32
    %c0_i32_0 = arith.constant 0 : i32
    %c0_i32_1 = arith.constant 0 : i32
    return %c0_i32, %c0_i32_0 : i32, i32
  }
  func.func @transform_10(%arg0: i32) -> (i32, i32) {
    %c0_i32 = arith.constant 0 : i32
    %c0_i32_0 = arith.constant 0 : i32
    return %arg0, %c0_i32 : i32, i32
  }
}

</mosaic_0001>

<llo_original>
// kernel: net_forward.1
$region0: #{net_forward.1}
  #allocation0 [shape = 'u32[]', space=smem, size = 0x4, offset = 0x4, fixed_abs, tag = 'smem constant byte address 0x4 - core index']
  #allocation1 [shape = 'u32[72,128]{1,0:T(1,128)}', space=vmem, size = 0x9000, scoped, tag = 'internal scratch']
  %s0 = inlined_call_operand.vmem [shape: f32[14,8,28], index: 0, kind: input, shape index: {}]
  %s1 = inlined_call_operand.vmem [shape: f32[14,8,28], index: 1, kind: input, shape index: {}]
  %s2 = inlined_call_operand.vmem [shape: f32[5,2,28,120], index: 2, kind: input, shape index: {}]
  %s3 = inlined_call_operand.vmem [shape: f32[1,120], index: 3, kind: input, shape index: {}]
  %s4 = inlined_call_operand.vmem [shape: f32[5,2,120,80], index: 4, kind: input, shape index: {}]
  %s5 = inlined_call_operand.vmem [shape: f32[1,80], index: 5, kind: input, shape index: {}]
  %s6 = inlined_call_operand.vmem [shape: f32[4,80,50], index: 6, kind: input, shape index: {}]
  %s7 = inlined_call_operand.vmem [shape: f32[1,50], index: 7, kind: input, shape index: {}]
  %s8 = inlined_call_operand.vmem [shape: f32[50,10], index: 8, kind: input, shape index: {}]
  %s9 = inlined_call_operand.vmem [shape: f32[1,10], index: 9, kind: input, shape index: {}]
  %s10 = inlined_call_operand.vmem [shape: f32[8,10], index: 10, kind: output, shape index: {}]
  %s11 = sld [smem:[#allocation0]]
  $region50: #{net_forward.1} parent=0
    _
  %s13 = ssub.s32 1, %s11
  %s14 = scalar_select 0, %s13, %s11
  // Predicated region
  $region2: #{net_forward.1} parent=0 // pred_check
    _
  $region3: #{net_forward.1} parent=0 // pred_check_branch
    %16 = sbr.rel (0) target = $region5
  $region4: #{net_forward.1} parent=0 // pred_region
    _
  $region5: #{net_forward.1} parent=0 // pred_fallthru
    _
  // Predicated region
  $region6: #{net_forward.1} parent=0 // pred_check
    _
  $region7: #{net_forward.1} parent=0 // pred_check_branch
    %18 = sbr.rel (0) target = $region9
  $region8: #{net_forward.1} parent=0 // pred_region
    _
  $region9: #{net_forward.1} parent=0 // pred_fallthru
    _
  // Predicated region
  $region10: #{net_forward.1} parent=0 // pred_check
    _
  $region11: #{net_forward.1} parent=0 // pred_check_branch
    %20 = sbr.rel (0) target = $region13
  $region12: #{net_forward.1} parent=0 // pred_region
    _
  $region13: #{net_forward.1} parent=0 // pred_fallthru
    _
  // Predicated region
  $region14: #{net_forward.1} parent=0 // pred_check
    _
  $region15: #{net_forward.1} parent=0 // pred_check_branch
    %22 = sbr.rel (0) target = $region17
  $region16: #{net_forward.1} parent=0 // pred_region
    _
  $region17: #{net_forward.1} parent=0 // pred_fallthru
    _
  // Predicated region
  $region18: #{net_forward.1} parent=0 // pred_check
    _
  $region19: #{net_forward.1} parent=0 // pred_check_branch
    %24 = sbr.rel (0) target = $region21
  $region20: #{net_forward.1} parent=0 // pred_region
    _
  $region21: #{net_forward.1} parent=0 // pred_fallthru
    _
  // Predicated region
  $region22: #{net_forward.1} parent=0 // pred_check
    _
  $region23: #{net_forward.1} parent=0 // pred_check_branch
    %26 = sbr.rel (0) target = $region25
  $region24: #{net_forward.1} parent=0 // pred_region
    _
  $region25: #{net_forward.1} parent=0 // pred_fallthru
    _
  // Predicated region
  $region26: #{net_forward.1} parent=0 // pred_check
    _
  $region27: #{net_forward.1} parent=0 // pred_check_branch
    %28 = sbr.rel (0) target = $region29
  $region28: #{net_forward.1} parent=0 // pred_region
    _
  $region29: #{net_forward.1} parent=0 // pred_fallthru
    _
  // Predicated region
  $region30: #{net_forward.1} parent=0 // pred_check
    _
  $region31: #{net_forward.1} parent=0 // pred_check_branch
    %30 = sbr.rel (0) target = $region33
  $region32: #{net_forward.1} parent=0 // pred_region
    _
  $region33: #{net_forward.1} parent=0 // pred_fallthru
    _
  // Predicated region
  $region34: #{net_forward.1} parent=0 // pred_check
    _
  $region35: #{net_forward.1} parent=0 // pred_check_branch
    %32 = sbr.rel (0) target = $region37
  $region36: #{net_forward.1} parent=0 // pred_region
    _
  $region37: #{net_forward.1} parent=0 // pred_fallthru
    _
  // Predicated region
  $region38: #{net_forward.1} parent=0 // pred_check
    _
  $region39: #{net_forward.1} parent=0 // pred_check_branch
    %34 = sbr.rel (0) target = $region41
  $region40: #{net_forward.1} parent=0 // pred_region
    _
  $region41: #{net_forward.1} parent=0 // pred_fallthru
    _
  %v35 = vld [vmem:[%s0] sm:$0xff]
  %v36 = vld [vmem:[%s0 + $0x8] sm:$0xff]
  %v37 = vld [vmem:[%s0 + $0x10] sm:$0xff]
  %v38 = vld [vmem:[%s0 + $0x18] sm:$0xff]
  %v39 = vld [vmem:[%s0 + $0x20] sm:$0xff]
  %v40 = vld [vmem:[%s0 + $0x28] sm:$0xff]
  %v41 = vld [vmem:[%s0 + $0x30] sm:$0xff]
  %v42 = vld [vmem:[%s0 + $0x38] sm:$0xff]
  %v43 = vld [vmem:[%s0 + $0x40] sm:$0xff]
  %v44 = vld [vmem:[%s0 + $0x48] sm:$0xff]
  %v45 = vld [vmem:[%s0 + $0x50] sm:$0xff]
  %v46 = vld [vmem:[%s0 + $0x58] sm:$0xff]
  %v47 = vld [vmem:[%s0 + $0x60] sm:$0xff]
  %v48 = vld [vmem:[%s0 + $0x68] sm:$0xff]
  %v49 = vld [vmem:[%s1] sm:$0xff]
  %v50 = vld [vmem:[%s1 + $0x8] sm:$0xff]
  %v51 = vld [vmem:[%s1 + $0x10] sm:$0xff]
  %v52 = vld [vmem:[%s1 + $0x18] sm:$0xff]
  %v53 = vld [vmem:[%s1 + $0x20] sm:$0xff]
  %v54 = vld [vmem:[%s1 + $0x28] sm:$0xff]
  %v55 = vld [vmem:[%s1 + $0x30] sm:$0xff]
  %v56 = vld [vmem:[%s1 + $0x38] sm:$0xff]
  %v57 = vld [vmem:[%s1 + $0x40] sm:$0xff]
  %v58 = vld [vmem:[%s1 + $0x48] sm:$0xff]
  %v59 = vld [vmem:[%s1 + $0x50] sm:$0xff]
  %v60 = vld [vmem:[%s1 + $0x58] sm:$0xff]
  %v61 = vld [vmem:[%s1 + $0x60] sm:$0xff]
  %v62 = vld [vmem:[%s1 + $0x68] sm:$0xff]
  %v63 = vld [vmem:[%s2] sm:$0xff]
  %v64 = vld [vmem:[%s2 + $0x8] sm:$0xff]
  %v65 = vld [vmem:[%s2 + $0x10] sm:$0xff]
  %v66 = vld [vmem:[%s2 + $0x18] sm:$0xf]
  %s67 = scalar_lea.vmem %s2, 32
  %v68 = vld [vmem:[%s67] sm:$0xff]
  %v69 = vld [vmem:[%s67 + $0x8] sm:$0xff]
  %v70 = vld [vmem:[%s67 + $0x10] sm:$0xff]
  %v71 = vld [vmem:[%s67 + $0x18] sm:$0xf]
  %s72 = scalar_lea.vmem %s2, 64
  %v73 = vld [vmem:[%s72] sm:$0xff]
  %v74 = vld [vmem:[%s72 + $0x8] sm:$0xff]
  %v75 = vld [vmem:[%s72 + $0x10] sm:$0xff]
  %v76 = vld [vmem:[%s72 + $0x18] sm:$0xf]
  %vm77 = vcmask 228352
  %v79 = vsel %vm77, %v49, 0
  %v82 = vsel %vm77, %v50, 0
  %v85 = vsel %vm77, %v51, 0
  %v88 = vsel %vm77, %v52, 0
  %v91 = vsel %vm77, %v53, 0
  %v94 = vsel %vm77, %v54, 0
  %v97 = vsel %vm77, %v55, 0
  %v100 = vsel %vm77, %v56, 0
  %v103 = vsel %vm77, %v57, 0
  %v106 = vsel %vm77, %v58, 0
  %v109 = vsel %vm77, %v59, 0
  %v112 = vsel %vm77, %v60, 0
  %vm114 = vcmask 1043456
  %v116 = vsel %vm114, %v76, 0
  %118 = vmatpush.msra.mxu0 0.0
  %119 = vmatpush.msra.mxu0 0.0
  %120 = vmatpush.msra.mxu0 0.0
  %121 = vmatpush.msra.mxu0 0.0
  %122 = vmatpush.msra.mxu0 0.0
  %123 = vmatpush.msra.mxu0 0.0
  %124 = vmatpush.msra.mxu0 0.0
  %125 = vmatpush.msra.mxu0 0.0
  %126 = vmatpush.msra.mxu0 0.0
  %127 = vmatpush.msra.mxu0 0.0
  %128 = vmatpush.msra.mxu0 0.0
  %129 = vmatpush.msra.mxu0 0.0
  %130 = vmatpush.msra.mxu0 %v116
  %131 = vmatpush.msra.mxu0 %v75
  %132 = vmatpush.msra.mxu0 %v74
  %133 = vmatpush.msra.mxu0 %v73
  %134 = vmatmul.f32.gmra.mxu0 %v79
  %v135 = vpop.f32.mrf.mxu0
  %v136 = vadd.f32 0.0, %v135
  %137 = vmatmul.f32.gmra.mxu0 %v82
  %v138 = vpop.f32.mrf.mxu0
  %v139 = vadd.f32 0.0, %v138
  %140 = vmatmul.f32.gmra.mxu0 %v85
  %v141 = vpop.f32.mrf.mxu0
  %v142 = vadd.f32 0.0, %v141
  %143 = vmatmul.f32.gmra.mxu0 %v88
  %v144 = vpop.f32.mrf.mxu0
  %v145 = vadd.f32 0.0, %v144
  %146 = vmatmul.f32.gmra.mxu0 %v91
  %v147 = vpop.f32.mrf.mxu0
  %v148 = vadd.f32 0.0, %v147
  %149 = vmatmul.f32.gmra.mxu0 %v94
  %v150 = vpop.f32.mrf.mxu0
  %v151 = vadd.f32 0.0, %v150
  %152 = vmatmul.f32.gmra.mxu0 %v97
  %v153 = vpop.f32.mrf.mxu0
  %v154 = vadd.f32 0.0, %v153
  %155 = vmatmul.f32.gmra.mxu0 %v100
  %v156 = vpop.f32.mrf.mxu0
  %v157 = vadd.f32 0.0, %v156
  %158 = vmatmul.f32.gmra.mxu0 %v103
  %v159 = vpop.f32.mrf.mxu0
  %v160 = vadd.f32 0.0, %v159
  %161 = vmatmul.f32.gmra.mxu0 %v106
  %v162 = vpop.f32.mrf.mxu0
  %v163 = vadd.f32 0.0, %v162
  %164 = vmatmul.f32.gmra.mxu0 %v109
  %v165 = vpop.f32.mrf.mxu0
  %v166 = vadd.f32 0.0, %v165
  %167 = vmatmul.f32.gmra.mxu0 %v112
  %v168 = vpop.f32.mrf.mxu0
  %v169 = vadd.f32 0.0, %v168
  %170 = vdwg.mxu0
  %v172 = vsel %vm77, %v35, 0
  %v175 = vsel %vm77, %v36, 0
  %v178 = vsel %vm77, %v37, 0
  %v181 = vsel %vm77, %v38, 0
  %v184 = vsel %vm77, %v39, 0
  %v187 = vsel %vm77, %v40, 0
  %v190 = vsel %vm77, %v41, 0
  %v193 = vsel %vm77, %v42, 0
  %v196 = vsel %vm77, %v43, 0
  %v199 = vsel %vm77, %v44, 0
  %v202 = vsel %vm77, %v45, 0
  %v205 = vsel %vm77, %v46, 0
  %v208 = vsel %vm114, %v66, 0
  %210 = vmatpush.msra.mxu0 0.0
  %211 = vmatpush.msra.mxu0 0.0
  %212 = vmatpush.msra.mxu0 0.0
  %213 = vmatpush.msra.mxu0 0.0
  %214 = vmatpush.msra.mxu0 0.0
  %215 = vmatpush.msra.mxu0 0.0
  %216 = vmatpush.msra.mxu0 0.0
  %217 = vmatpush.msra.mxu0 0.0
  %218 = vmatpush.msra.mxu0 0.0
  %219 = vmatpush.msra.mxu0 0.0
  %220 = vmatpush.msra.mxu0 0.0
  %221 = vmatpush.msra.mxu0 0.0
  %222 = vmatpush.msra.mxu0 %v208
  %223 = vmatpush.msra.mxu0 %v65
  %224 = vmatpush.msra.mxu0 %v64
  %225 = vmatpush.msra.mxu0 %v63
  %226 = vmatmul.f32.gmra.mxu0 %v172
  %v227 = vpop.f32.mrf.mxu0
  %v228 = vadd.f32 %v136, %v227
  %229 = vmatmul.f32.gmra.mxu0 %v175
  %v230 = vpop.f32.mrf.mxu0
  %v231 = vadd.f32 %v139, %v230
  %232 = vmatmul.f32.gmra.mxu0 %v178
  %v233 = vpop.f32.mrf.mxu0
  %v234 = vadd.f32 %v142, %v233
  %235 = vmatmul.f32.gmra.mxu0 %v181
  %v236 = vpop.f32.mrf.mxu0
  %v237 = vadd.f32 %v145, %v236
  %238 = vmatmul.f32.gmra.mxu0 %v184
  %v239 = vpop.f32.mrf.mxu0
  %v240 = vadd.f32 %v148, %v239
  %241 = vmatmul.f32.gmra.mxu0 %v187
  %v242 = vpop.f32.mrf.mxu0
  %v243 = vadd.f32 %v151, %v242
  %244 = vmatmul.f32.gmra.mxu0 %v190
  %v245 = vpop.f32.mrf.mxu0
  %v246 = vadd.f32 %v154, %v245
  %247 = vmatmul.f32.gmra.mxu0 %v193
  %v248 = vpop.f32.mrf.mxu0
  %v249 = vadd.f32 %v157, %v248
  %250 = vmatmul.f32.gmra.mxu0 %v196
  %v251 = vpop.f32.mrf.mxu0
  %v252 = vadd.f32 %v160, %v251
  %253 = vmatmul.f32.gmra.mxu0 %v199
  %v254 = vpop.f32.mrf.mxu0
  %v255 = vadd.f32 %v163, %v254
  %256 = vmatmul.f32.gmra.mxu0 %v202
  %v257 = vpop.f32.mrf.mxu0
  %v258 = vadd.f32 %v166, %v257
  %259 = vmatmul.f32.gmra.mxu0 %v205
  %v260 = vpop.f32.mrf.mxu0
  %v261 = vadd.f32 %v169, %v260
  %262 = vdwg.mxu0
  %s263 = scalar_lea.vmem %s2, 96
  %v264 = vld [vmem:[%s263] sm:$0xff]
  %v265 = vld [vmem:[%s263 + $0x8] sm:$0xff]
  %v266 = vld [vmem:[%s263 + $0x10] sm:$0xff]
  %v267 = vld [vmem:[%s263 + $0x18] sm:$0xf]
  %v269 = vsel %vm114, %v267, 0
  %271 = vmatpush.msra.mxu0 0.0
  %272 = vmatpush.msra.mxu0 0.0
  %273 = vmatpush.msra.mxu0 0.0
  %274 = vmatpush.msra.mxu0 0.0
  %275 = vmatpush.msra.mxu0 0.0
  %276 = vmatpush.msra.mxu0 0.0
  %277 = vmatpush.msra.mxu0 0.0
  %278 = vmatpush.msra.mxu0 0.0
  %279 = vmatpush.msra.mxu0 0.0
  %280 = vmatpush.msra.mxu0 0.0
  %281 = vmatpush.msra.mxu0 0.0
  %282 = vmatpush.msra.mxu0 0.0
  %283 = vmatpush.msra.mxu0 %v269
  %284 = vmatpush.msra.mxu0 %v266
  %285 = vmatpush.msra.mxu0 %v265
  %286 = vmatpush.msra.mxu0 %v264
  %287 = vmatmul.f32.gmra.mxu0 %v79
  %v288 = vpop.f32.mrf.mxu0
  %v289 = vadd.f32 0.0, %v288
  %290 = vmatmul.f32.gmra.mxu0 %v82
  %v291 = vpop.f32.mrf.mxu0
  %v292 = vadd.f32 0.0, %v291
  %293 = vmatmul.f32.gmra.mxu0 %v85
  %v294 = vpop.f32.mrf.mxu0
  %v295 = vadd.f32 0.0, %v294
  %296 = vmatmul.f32.gmra.mxu0 %v88
  %v297 = vpop.f32.mrf.mxu0
  %v298 = vadd.f32 0.0, %v297
  %299 = vmatmul.f32.gmra.mxu0 %v91
  %v300 = vpop.f32.mrf.mxu0
  %v301 = vadd.f32 0.0, %v300
  %302 = vmatmul.f32.gmra.mxu0 %v94
  %v303 = vpop.f32.mrf.mxu0
  %v304 = vadd.f32 0.0, %v303
  %305 = vmatmul.f32.gmra.mxu0 %v97
  %v306 = vpop.f32.mrf.mxu0
  %v307 = vadd.f32 0.0, %v306
  %308 = vmatmul.f32.gmra.mxu0 %v100
  %v309 = vpop.f32.mrf.mxu0
  %v310 = vadd.f32 0.0, %v309
  %311 = vmatmul.f32.gmra.mxu0 %v103
  %v312 = vpop.f32.mrf.mxu0
  %v313 = vadd.f32 0.0, %v312
  %314 = vmatmul.f32.gmra.mxu0 %v106
  %v315 = vpop.f32.mrf.mxu0
  %v316 = vadd.f32 0.0, %v315
  %317 = vmatmul.f32.gmra.mxu0 %v109
  %v318 = vpop.f32.mrf.mxu0
  %v319 = vadd.f32 0.0, %v318
  %320 = vmatmul.f32.gmra.mxu0 %v112
  %v321 = vpop.f32.mrf.mxu0
  %v322 = vadd.f32 0.0, %v321
  %323 = vdwg.mxu0
  %v325 = vsel %vm114, %v71, 0
  %327 = vmatpush.msra.mxu0 0.0
  %328 = vmatpush.msra.mxu0 0.0
  %329 = vmatpush.msra.mxu0 0.0
  %330 = vmatpush.msra.mxu0 0.0
  %331 = vmatpush.msra.mxu0 0.0
  %332 = vmatpush.msra.mxu0 0.0
  %333 = vmatpush.msra.mxu0 0.0
  %334 = vmatpush.msra.mxu0 0.0
  %335 = vmatpush.msra.mxu0 0.0
  %336 = vmatpush.msra.mxu0 0.0
  %337 = vmatpush.msra.mxu0 0.0
  %338 = vmatpush.msra.mxu0 0.0
  %339 = vmatpush.msra.mxu0 %v325
  %340 = vmatpush.msra.mxu0 %v70
  %341 = vmatpush.msra.mxu0 %v69
  %342 = vmatpush.msra.mxu0 %v68
  %343 = vmatmul.f32.gmra.mxu0 %v172
  %v344 = vpop.f32.mrf.mxu0
  %v345 = vadd.f32 %v289, %v344
  %346 = vmatmul.f32.gmra.mxu0 %v175
  %v347 = vpop.f32.mrf.mxu0
  %v348 = vadd.f32 %v292, %v347
  %349 = vmatmul.f32.gmra.mxu0 %v178
  %v350 = vpop.f32.mrf.mxu0
  %v351 = vadd.f32 %v295, %v350
  %352 = vmatmul.f32.gmra.mxu0 %v181
  %v353 = vpop.f32.mrf.mxu0
  %v354 = vadd.f32 %v298, %v353
  %355 = vmatmul.f32.gmra.mxu0 %v184
  %v356 = vpop.f32.mrf.mxu0
  %v357 = vadd.f32 %v301, %v356
  %358 = vmatmul.f32.gmra.mxu0 %v187
  %v359 = vpop.f32.mrf.mxu0
  %v360 = vadd.f32 %v304, %v359
  %361 = vmatmul.f32.gmra.mxu0 %v190
  %v362 = vpop.f32.mrf.mxu0
  %v363 = vadd.f32 %v307, %v362
  %364 = vmatmul.f32.gmra.mxu0 %v193
  %v365 = vpop.f32.mrf.mxu0
  %v366 = vadd.f32 %v310, %v365
  %367 = vmatmul.f32.gmra.mxu0 %v196
  %v368 = vpop.f32.mrf.mxu0
  %v369 = vadd.f32 %v313, %v368
  %370 = vmatmul.f32.gmra.mxu0 %v199
  %v371 = vpop.f32.mrf.mxu0
  %v372 = vadd.f32 %v316, %v371
  %373 = vmatmul.f32.gmra.mxu0 %v202
  %v374 = vpop.f32.mrf.mxu0
  %v375 = vadd.f32 %v319, %v374
  %376 = vmatmul.f32.gmra.mxu0 %v205
  %v377 = vpop.f32.mrf.mxu0
  %v378 = vadd.f32 %v322, %v377
  %379 = vdwg.mxu0
  %s380 = scalar_lea.vmem %s2, 128
  %v381 = vld [vmem:[%s380] sm:$0xff]
  %v382 = vld [vmem:[%s380 + $0x8] sm:$0xff]
  %v383 = vld [vmem:[%s380 + $0x10] sm:$0xff]
  %v384 = vld [vmem:[%s380 + $0x18] sm:$0xf]
  %v386 = vsel %vm77, %v47, 0
  %v389 = vsel %vm114, %v384, 0
  %391 = vmatpush.msra.mxu0 0.0
  %392 = vmatpush.msra.mxu0 0.0
  %393 = vmatpush.msra.mxu0 0.0
  %394 = vmatpush.msra.mxu0 0.0
  %395 = vmatpush.msra.mxu0 0.0
  %396 = vmatpush.msra.mxu0 0.0
  %397 = vmatpush.msra.mxu0 0.0
  %398 = vmatpush.msra.mxu0 0.0
  %399 = vmatpush.msra.mxu0 0.0
  %400 = vmatpush.msra.mxu0 0.0
  %401 = vmatpush.msra.mxu0 0.0
  %402 = vmatpush.msra.mxu0 0.0
  %403 = vmatpush.msra.mxu0 %v389
  %404 = vmatpush.msra.mxu0 %v383
  %405 = vmatpush.msra.mxu0 %v382
  %406 = vmatpush.msra.mxu0 %v381
  %407 = vmatmul.f32.gmra.mxu0 %v175
  %v408 = vpop.f32.mrf.mxu0
  %v409 = vadd.f32 0.0, %v408
  %410 = vmatmul.f32.gmra.mxu0 %v178
  %v411 = vpop.f32.mrf.mxu0
  %v412 = vadd.f32 0.0, %v411
  %413 = vmatmul.f32.gmra.mxu0 %v181
  %v414 = vpop.f32.mrf.mxu0
  %v415 = vadd.f32 0.0, %v414
  %416 = vmatmul.f32.gmra.mxu0 %v184
  %v417 = vpop.f32.mrf.mxu0
  %v418 = vadd.f32 0.0, %v417
  %419 = vmatmul.f32.gmra.mxu0 %v187
  %v420 = vpop.f32.mrf.mxu0
  %v421 = vadd.f32 0.0, %v420
  %422 = vmatmul.f32.gmra.mxu0 %v190
  %v423 = vpop.f32.mrf.mxu0
  %v424 = vadd.f32 0.0, %v423
  %425 = vmatmul.f32.gmra.mxu0 %v193
  %v426 = vpop.f32.mrf.mxu0
  %v427 = vadd.f32 0.0, %v426
  %428 = vmatmul.f32.gmra.mxu0 %v196
  %v429 = vpop.f32.mrf.mxu0
  %v430 = vadd.f32 0.0, %v429
  %431 = vmatmul.f32.gmra.mxu0 %v199
  %v432 = vpop.f32.mrf.mxu0
  %v433 = vadd.f32 0.0, %v432
  %434 = vmatmul.f32.gmra.mxu0 %v202
  %v435 = vpop.f32.mrf.mxu0
  %v436 = vadd.f32 0.0, %v435
  %437 = vmatmul.f32.gmra.mxu0 %v205
  %v438 = vpop.f32.mrf.mxu0
  %v439 = vadd.f32 0.0, %v438
  %440 = vmatmul.f32.gmra.mxu0 %v386
  %v441 = vpop.f32.mrf.mxu0
  %v442 = vadd.f32 0.0, %v441
  %443 = vdwg.mxu0
  %v444 = vadd.f32 %v228, %v409
  %v445 = vadd.f32 %v231, %v412
  %v446 = vadd.f32 %v234, %v415
  %v447 = vadd.f32 %v237, %v418
  %v448 = vadd.f32 %v240, %v421
  %v449 = vadd.f32 %v243, %v424
  %v450 = vadd.f32 %v246, %v427
  %v451 = vadd.f32 %v249, %v430
  %v452 = vadd.f32 %v252, %v433
  %v453 = vadd.f32 %v255, %v436
  %v454 = vadd.f32 %v258, %v439
  %v455 = vadd.f32 %v261, %v442
  %s456 = scalar_lea.vmem %s2, 160
  %v457 = vld [vmem:[%s456] sm:$0xff]
  %v458 = vld [vmem:[%s456 + $0x8] sm:$0xff]
  %v459 = vld [vmem:[%s456 + $0x10] sm:$0xff]
  %v460 = vld [vmem:[%s456 + $0x18] sm:$0xf]
  %v462 = vsel %vm114, %v460, 0
  %464 = vmatpush.msra.mxu0 0.0
  %465 = vmatpush.msra.mxu0 0.0
  %466 = vmatpush.msra.mxu0 0.0
  %467 = vmatpush.msra.mxu0 0.0
  %468 = vmatpush.msra.mxu0 0.0
  %469 = vmatpush.msra.mxu0 0.0
  %470 = vmatpush.msra.mxu0 0.0
  %471 = vmatpush.msra.mxu0 0.0
  %472 = vmatpush.msra.mxu0 0.0
  %473 = vmatpush.msra.mxu0 0.0
  %474 = vmatpush.msra.mxu0 0.0
  %475 = vmatpush.msra.mxu0 0.0
  %476 = vmatpush.msra.mxu0 %v462
  %477 = vmatpush.msra.mxu0 %v459
  %478 = vmatpush.msra.mxu0 %v458
  %479 = vmatpush.msra.mxu0 %v457
  %480 = vmatmul.f32.gmra.mxu0 %v175
  %v481 = vpop.f32.mrf.mxu0
  %v482 = vadd.f32 0.0, %v481
  %483 = vmatmul.f32.gmra.mxu0 %v178
  %v484 = vpop.f32.mrf.mxu0
  %v485 = vadd.f32 0.0, %v484
  %486 = vmatmul.f32.gmra.mxu0 %v181
  %v487 = vpop.f32.mrf.mxu0
  %v488 = vadd.f32 0.0, %v487
  %489 = vmatmul.f32.gmra.mxu0 %v184
  %v490 = vpop.f32.mrf.mxu0
  %v491 = vadd.f32 0.0, %v490
  %492 = vmatmul.f32.gmra.mxu0 %v187
  %v493 = vpop.f32.mrf.mxu0
  %v494 = vadd.f32 0.0, %v493
  %495 = vmatmul.f32.gmra.mxu0 %v190
  %v496 = vpop.f32.mrf.mxu0
  %v497 = vadd.f32 0.0, %v496
  %498 = vmatmul.f32.gmra.mxu0 %v193
  %v499 = vpop.f32.mrf.mxu0
  %v500 = vadd.f32 0.0, %v499
  %501 = vmatmul.f32.gmra.mxu0 %v196
  %v502 = vpop.f32.mrf.mxu0
  %v503 = vadd.f32 0.0, %v502
  %504 = vmatmul.f32.gmra.mxu0 %v199
  %v505 = vpop.f32.mrf.mxu0
  %v506 = vadd.f32 0.0, %v505
  %507 = vmatmul.f32.gmra.mxu0 %v202
  %v508 = vpop.f32.mrf.mxu0
  %v509 = vadd.f32 0.0, %v508
  %510 = vmatmul.f32.gmra.mxu0 %v205
  %v511 = vpop.f32.mrf.mxu0
  %v512 = vadd.f32 0.0, %v511
  %513 = vmatmul.f32.gmra.mxu0 %v386
  %v514 = vpop.f32.mrf.mxu0
  %v515 = vadd.f32 0.0, %v514
  %516 = vdwg.mxu0
  %v517 = vadd.f32 %v345, %v482
  %v518 = vadd.f32 %v348, %v485
  %v519 = vadd.f32 %v351, %v488
  %v520 = vadd.f32 %v354, %v491
  %v521 = vadd.f32 %v357, %v494
  %v522 = vadd.f32 %v360, %v497
  %v523 = vadd.f32 %v363, %v500
  %v524 = vadd.f32 %v366, %v503
  %v525 = vadd.f32 %v369, %v506
  %v526 = vadd.f32 %v372, %v509
  %v527 = vadd.f32 %v375, %v512
  %v528 = vadd.f32 %v378, %v515
  %s529 = scalar_lea.vmem %s2, 192
  %v530 = vld [vmem:[%s529] sm:$0xff]
  %v531 = vld [vmem:[%s529 + $0x8] sm:$0xff]
  %v532 = vld [vmem:[%s529 + $0x10] sm:$0xff]
  %v533 = vld [vmem:[%s529 + $0x18] sm:$0xf]
  %v535 = vsel %vm77, %v61, 0
  %v538 = vsel %vm114, %v533, 0
  %540 = vmatpush.msra.mxu0 0.0
  %541 = vmatpush.msra.mxu0 0.0
  %542 = vmatpush.msra.mxu0 0.0
  %543 = vmatpush.msra.mxu0 0.0
  %544 = vmatpush.msra.mxu0 0.0
  %545 = vmatpush.msra.mxu0 0.0
  %546 = vmatpush.msra.mxu0 0.0
  %547 = vmatpush.msra.mxu0 0.0
  %548 = vmatpush.msra.mxu0 0.0
  %549 = vmatpush.msra.mxu0 0.0
  %550 = vmatpush.msra.mxu0 0.0
  %551 = vmatpush.msra.mxu0 0.0
  %552 = vmatpush.msra.mxu0 %v538
  %553 = vmatpush.msra.mxu0 %v532
  %554 = vmatpush.msra.mxu0 %v531
  %555 = vmatpush.msra.mxu0 %v530
  %556 = vmatmul.f32.gmra.mxu0 %v82
  %v557 = vpop.f32.mrf.mxu0
  %v558 = vadd.f32 0.0, %v557
  %559 = vmatmul.f32.gmra.mxu0 %v85
  %v560 = vpop.f32.mrf.mxu0
  %v561 = vadd.f32 0.0, %v560
  %562 = vmatmul.f32.gmra.mxu0 %v88
  %v563 = vpop.f32.mrf.mxu0
  %v564 = vadd.f32 0.0, %v563
  %565 = vmatmul.f32.gmra.mxu0 %v91
  %v566 = vpop.f32.mrf.mxu0
  %v567 = vadd.f32 0.0, %v566
  %568 = vmatmul.f32.gmra.mxu0 %v94
  %v569 = vpop.f32.mrf.mxu0
  %v570 = vadd.f32 0.0, %v569
  %571 = vmatmul.f32.gmra.mxu0 %v97
  %v572 = vpop.f32.mrf.mxu0
  %v573 = vadd.f32 0.0, %v572
  %574 = vmatmul.f32.gmra.mxu0 %v100
  %v575 = vpop.f32.mrf.mxu0
  %v576 = vadd.f32 0.0, %v575
  %577 = vmatmul.f32.gmra.mxu0 %v103
  %v578 = vpop.f32.mrf.mxu0
  %v579 = vadd.f32 0.0, %v578
  %580 = vmatmul.f32.gmra.mxu0 %v106
  %v581 = vpop.f32.mrf.mxu0
  %v582 = vadd.f32 0.0, %v581
  %583 = vmatmul.f32.gmra.mxu0 %v109
  %v584 = vpop.f32.mrf.mxu0
  %v585 = vadd.f32 0.0, %v584
  %586 = vmatmul.f32.gmra.mxu0 %v112
  %v587 = vpop.f32.mrf.mxu0
  %v588 = vadd.f32 0.0, %v587
  %589 = vmatmul.f32.gmra.mxu0 %v535
  %v590 = vpop.f32.mrf.mxu0
  %v591 = vadd.f32 0.0, %v590
  %592 = vdwg.mxu0
  %v593 = vadd.f32 %v444, %v558
  %v594 = vadd.f32 %v445, %v561
  %v595 = vadd.f32 %v446, %v564
  %v596 = vadd.f32 %v447, %v567
  %v597 = vadd.f32 %v448, %v570
  %v598 = vadd.f32 %v449, %v573
  %v599 = vadd.f32 %v450, %v576
  %v600 = vadd.f32 %v451, %v579
  %v601 = vadd.f32 %v452, %v582
  %v602 = vadd.f32 %v453, %v585
  %v603 = vadd.f32 %v454, %v588
  %v604 = vadd.f32 %v455, %v591
  %s605 = scalar_lea.vmem %s2, 224
  %v606 = vld [vmem:[%s605] sm:$0xff]
  %v607 = vld [vmem:[%s605 + $0x8] sm:$0xff]
  %v608 = vld [vmem:[%s605 + $0x10] sm:$0xff]
  %v609 = vld [vmem:[%s605 + $0x18] sm:$0xf]
  %v611 = vsel %vm114, %v609, 0
  %613 = vmatpush.msra.mxu0 0.0
  %614 = vmatpush.msra.mxu0 0.0
  %615 = vmatpush.msra.mxu0 0.0
  %616 = vmatpush.msra.mxu0 0.0
  %617 = vmatpush.msra.mxu0 0.0
  %618 = vmatpush.msra.mxu0 0.0
  %619 = vmatpush.msra.mxu0 0.0
  %620 = vmatpush.msra.mxu0 0.0
  %621 = vmatpush.msra.mxu0 0.0
  %622 = vmatpush.msra.mxu0 0.0
  %623 = vmatpush.msra.mxu0 0.0
  %624 = vmatpush.msra.mxu0 0.0
  %625 = vmatpush.msra.mxu0 %v611
  %626 = vmatpush.msra.mxu0 %v608
  %627 = vmatpush.msra.mxu0 %v607
  %628 = vmatpush.msra.mxu0 %v606
  %629 = vmatmul.f32.gmra.mxu0 %v82
  %v630 = vpop.f32.mrf.mxu0
  %v631 = vadd.f32 0.0, %v630
  %632 = vmatmul.f32.gmra.mxu0 %v85
  %v633 = vpop.f32.mrf.mxu0
  %v634 = vadd.f32 0.0, %v633
  %635 = vmatmul.f32.gmra.mxu0 %v88
  %v636 = vpop.f32.mrf.mxu0
  %v637 = vadd.f32 0.0, %v636
  %638 = vmatmul.f32.gmra.mxu0 %v91
  %v639 = vpop.f32.mrf.mxu0
  %v640 = vadd.f32 0.0, %v639
  %641 = vmatmul.f32.gmra.mxu0 %v94
  %v642 = vpop.f32.mrf.mxu0
  %v643 = vadd.f32 0.0, %v642
  %644 = vmatmul.f32.gmra.mxu0 %v97
  %v645 = vpop.f32.mrf.mxu0
  %v646 = vadd.f32 0.0, %v645
  %647 = vmatmul.f32.gmra.mxu0 %v100
  %v648 = vpop.f32.mrf.mxu0
  %v649 = vadd.f32 0.0, %v648
  %650 = vmatmul.f32.gmra.mxu0 %v103
  %v651 = vpop.f32.mrf.mxu0
  %v652 = vadd.f32 0.0, %v651
  %653 = vmatmul.f32.gmra.mxu0 %v106
  %v654 = vpop.f32.mrf.mxu0
  %v655 = vadd.f32 0.0, %v654
  %656 = vmatmul.f32.gmra.mxu0 %v109
  %v657 = vpop.f32.mrf.mxu0
  %v658 = vadd.f32 0.0, %v657
  %659 = vmatmul.f32.gmra.mxu0 %v112
  %v660 = vpop.f32.mrf.mxu0
  %v661 = vadd.f32 0.0, %v660
  %662 = vmatmul.f32.gmra.mxu0 %v535
  %v663 = vpop.f32.mrf.mxu0
  %v664 = vadd.f32 0.0, %v663
  %665 = vdwg.mxu0
  %v666 = vadd.f32 %v517, %v631
  %v667 = vadd.f32 %v518, %v634
  %v668 = vadd.f32 %v519, %v637
  %v669 = vadd.f32 %v520, %v640
  %v670 = vadd.f32 %v521, %v643
  %v671 = vadd.f32 %v522, %v646
  %v672 = vadd.f32 %v523, %v649
  %v673 = vadd.f32 %v524, %v652
  %v674 = vadd.f32 %v525, %v655
  %v675 = vadd.f32 %v526, %v658
  %v676 = vadd.f32 %v527, %v661
  %v677 = vadd.f32 %v528, %v664
  %s678 = scalar_lea.vmem %s2, 256
  %v679 = vld [vmem:[%s678] sm:$0xff]
  %v680 = vld [vmem:[%s678 + $0x8] sm:$0xff]
  %v681 = vld [vmem:[%s678 + $0x10] sm:$0xff]
  %v682 = vld [vmem:[%s678 + $0x18] sm:$0xf]
  %v684 = vsel %vm77, %v48, 0
  %v687 = vsel %vm114, %v682, 0
  %689 = vmatpush.msra.mxu0 0.0
  %690 = vmatpush.msra.mxu0 0.0
  %691 = vmatpush.msra.mxu0 0.0
  %692 = vmatpush.msra.mxu0 0.0
  %693 = vmatpush.msra.mxu0 0.0
  %694 = vmatpush.msra.mxu0 0.0
  %695 = vmatpush.msra.mxu0 0.0
  %696 = vmatpush.msra.mxu0 0.0
  %697 = vmatpush.msra.mxu0 0.0
  %698 = vmatpush.msra.mxu0 0.0
  %699 = vmatpush.msra.mxu0 0.0
  %700 = vmatpush.msra.mxu0 0.0
  %701 = vmatpush.msra.mxu0 %v687
  %702 = vmatpush.msra.mxu0 %v681
  %703 = vmatpush.msra.mxu0 %v680
  %704 = vmatpush.msra.mxu0 %v679
  %705 = vmatmul.f32.gmra.mxu0 %v178
  %v706 = vpop.f32.mrf.mxu0
  %v707 = vadd.f32 0.0, %v706
  %708 = vmatmul.f32.gmra.mxu0 %v181
  %v709 = vpop.f32.mrf.mxu0
  %v710 = vadd.f32 0.0, %v709
  %711 = vmatmul.f32.gmra.mxu0 %v184
  %v712 = vpop.f32.mrf.mxu0
  %v713 = vadd.f32 0.0, %v712
  %714 = vmatmul.f32.gmra.mxu0 %v187
  %v715 = vpop.f32.mrf.mxu0
  %v716 = vadd.f32 0.0, %v715
  %717 = vmatmul.f32.gmra.mxu0 %v190
  %v718 = vpop.f32.mrf.mxu0
  %v719 = vadd.f32 0.0, %v718
  %720 = vmatmul.f32.gmra.mxu0 %v193
  %v721 = vpop.f32.mrf.mxu0
  %v722 = vadd.f32 0.0, %v721
  %723 = vmatmul.f32.gmra.mxu0 %v196
  %v724 = vpop.f32.mrf.mxu0
  %v725 = vadd.f32 0.0, %v724
  %726 = vmatmul.f32.gmra.mxu0 %v199
  %v727 = vpop.f32.mrf.mxu0
  %v728 = vadd.f32 0.0, %v727
  %729 = vmatmul.f32.gmra.mxu0 %v202
  %v730 = vpop.f32.mrf.mxu0
  %v731 = vadd.f32 0.0, %v730
  %732 = vmatmul.f32.gmra.mxu0 %v205
  %v733 = vpop.f32.mrf.mxu0
  %v734 = vadd.f32 0.0, %v733
  %735 = vmatmul.f32.gmra.mxu0 %v386
  %v736 = vpop.f32.mrf.mxu0
  %v737 = vadd.f32 0.0, %v736
  %738 = vmatmul.f32.gmra.mxu0 %v684
  %v739 = vpop.f32.mrf.mxu0
  %v740 = vadd.f32 0.0, %v739
  %741 = vdwg.mxu0
  %v742 = vadd.f32 %v593, %v707
  %v743 = vadd.f32 %v594, %v710
  %v744 = vadd.f32 %v595, %v713
  %v745 = vadd.f32 %v596, %v716
  %v746 = vadd.f32 %v597, %v719
  %v747 = vadd.f32 %v598, %v722
  %v748 = vadd.f32 %v599, %v725
  %v749 = vadd.f32 %v600, %v728
  %v750 = vadd.f32 %v601, %v731
  %v751 = vadd.f32 %v602, %v734
  %v752 = vadd.f32 %v603, %v737
  %v753 = vadd.f32 %v604, %v740
  %s754 = scalar_lea.vmem %s2, 288
  %v755 = vld [vmem:[%s754] sm:$0xff]
  %v756 = vld [vmem:[%s754 + $0x8] sm:$0xff]
  %v757 = vld [vmem:[%s754 + $0x10] sm:$0xff]
  %v758 = vld [vmem:[%s754 + $0x18] sm:$0xf]
  %v760 = vsel %vm114, %v758, 0
  %762 = vmatpush.msra.mxu0 0.0
  %763 = vmatpush.msra.mxu0 0.0
  %764 = vmatpush.msra.mxu0 0.0
  %765 = vmatpush.msra.mxu0 0.0
  %766 = vmatpush.msra.mxu0 0.0
  %767 = vmatpush.msra.mxu0 0.0
  %768 = vmatpush.msra.mxu0 0.0
  %769 = vmatpush.msra.mxu0 0.0
  %770 = vmatpush.msra.mxu0 0.0
  %771 = vmatpush.msra.mxu0 0.0
  %772 = vmatpush.msra.mxu0 0.0
  %773 = vmatpush.msra.mxu0 0.0
  %774 = vmatpush.msra.mxu0 %v760
  %775 = vmatpush.msra.mxu0 %v757
  %776 = vmatpush.msra.mxu0 %v756
  %777 = vmatpush.msra.mxu0 %v755
  %778 = vmatmul.f32.gmra.mxu0 %v178
  %v779 = vpop.f32.mrf.mxu0
  %v780 = vadd.f32 0.0, %v779
  %781 = vmatmul.f32.gmra.mxu0 %v181
  %v782 = vpop.f32.mrf.mxu0
  %v783 = vadd.f32 0.0, %v782
  %784 = vmatmul.f32.gmra.mxu0 %v184
  %v785 = vpop.f32.mrf.mxu0
  %v786 = vadd.f32 0.0, %v785
  %787 = vmatmul.f32.gmra.mxu0 %v187
  %v788 = vpop.f32.mrf.mxu0
  %v789 = vadd.f32 0.0, %v788
  %790 = vmatmul.f32.gmra.mxu0 %v190
  %v791 = vpop.f32.mrf.mxu0
  %v792 = vadd.f32 0.0, %v791
  %793 = vmatmul.f32.gmra.mxu0 %v193
  %v794 = vpop.f32.mrf.mxu0
  %v795 = vadd.f32 0.0, %v794
  %796 = vmatmul.f32.gmra.mxu0 %v196
  %v797 = vpop.f32.mrf.mxu0
  %v798 = vadd.f32 0.0, %v797
  %799 = vmatmul.f32.gmra.mxu0 %v199
  %v800 = vpop.f32.mrf.mxu0
  %v801 = vadd.f32 0.0, %v800
  %802 = vmatmul.f32.gmra.mxu0 %v202
  %v803 = vpop.f32.mrf.mxu0
  %v804 = vadd.f32 0.0, %v803
  %805 = vmatmul.f32.gmra.mxu0 %v205
  %v806 = vpop.f32.mrf.mxu0
  %v807 = vadd.f32 0.0, %v806
  %808 = vmatmul.f32.gmra.mxu0 %v386
  %v809 = vpop.f32.mrf.mxu0
  %v810 = vadd.f32 0.0, %v809
  %811 = vmatmul.f32.gmra.mxu0 %v684
  %v812 = vpop.f32.mrf.mxu0
  %v813 = vadd.f32 0.0, %v812
  %814 = vdwg.mxu0
  %v815 = vadd.f32 %v666, %v780
  %v816 = vadd.f32 %v667, %v783
  %v817 = vadd.f32 %v668, %v786
  %v818 = vadd.f32 %v669, %v789
  %v819 = vadd.f32 %v670, %v792
  %v820 = vadd.f32 %v671, %v795
  %v821 = vadd.f32 %v672, %v798
  %v822 = vadd.f32 %v673, %v801
  %v823 = vadd.f32 %v674, %v804
  %v824 = vadd.f32 %v675, %v807
  %v825 = vadd.f32 %v676, %v810
  %v826 = vadd.f32 %v677, %v813
  %827 = vmatpush.msra.mxu0 0.0
  %828 = vmatpush.msra.mxu0 0.0
  %829 = vmatpush.msra.mxu0 0.0
  %830 = vmatpush.msra.mxu0 0.0
  %831 = vmatpush.msra.mxu0 0.0
  %832 = vmatpush.msra.mxu0 0.0
  %833 = vmatpush.msra.mxu0 0.0
  %834 = vmatpush.msra.mxu0 0.0
  %835 = vmatpush.msra.mxu0 0.0
  %836 = vmatpush.msra.mxu0 0.0
  %837 = vmatpush.msra.mxu0 0.0
  %838 = vmatpush.msra.mxu0 0.0
  %839 = vmatpush.msra.mxu0 %v116
  %840 = vmatpush.msra.mxu0 %v75
  %841 = vmatpush.msra.mxu0 %v74
  %842 = vmatpush.msra.mxu0 %v73
  %843 = vmatmul.f32.gmra.mxu0 %v175
  %v844 = vpop.f32.mrf.mxu0
  %v845 = vadd.f32 0.0, %v844
  %846 = vmatmul.f32.gmra.mxu0 %v178
  %v847 = vpop.f32.mrf.mxu0
  %v848 = vadd.f32 0.0, %v847
  %849 = vmatmul.f32.gmra.mxu0 %v181
  %v850 = vpop.f32.mrf.mxu0
  %v851 = vadd.f32 0.0, %v850
  %852 = vmatmul.f32.gmra.mxu0 %v184
  %v853 = vpop.f32.mrf.mxu0
  %v854 = vadd.f32 0.0, %v853
  %855 = vmatmul.f32.gmra.mxu0 %v187
  %v856 = vpop.f32.mrf.mxu0
  %v857 = vadd.f32 0.0, %v856
  %858 = vmatmul.f32.gmra.mxu0 %v190
  %v859 = vpop.f32.mrf.mxu0
  %v860 = vadd.f32 0.0, %v859
  %861 = vmatmul.f32.gmra.mxu0 %v193
  %v862 = vpop.f32.mrf.mxu0
  %v863 = vadd.f32 0.0, %v862
  %864 = vmatmul.f32.gmra.mxu0 %v196
  %v865 = vpop.f32.mrf.mxu0
  %v866 = vadd.f32 0.0, %v865
  %867 = vmatmul.f32.gmra.mxu0 %v199
  %v868 = vpop.f32.mrf.mxu0
  %v869 = vadd.f32 0.0, %v868
  %870 = vmatmul.f32.gmra.mxu0 %v202
  %v871 = vpop.f32.mrf.mxu0
  %v872 = vadd.f32 0.0, %v871
  %873 = vmatmul.f32.gmra.mxu0 %v205
  %v874 = vpop.f32.mrf.mxu0
  %v875 = vadd.f32 0.0, %v874
  %876 = vmatmul.f32.gmra.mxu0 %v386
  %v877 = vpop.f32.mrf.mxu0
  %v878 = vadd.f32 0.0, %v877
  %879 = vdwg.mxu0
  %880 = vmatpush.msra.mxu0 0.0
  %881 = vmatpush.msra.mxu0 0.0
  %882 = vmatpush.msra.mxu0 0.0
  %883 = vmatpush.msra.mxu0 0.0
  %884 = vmatpush.msra.mxu0 0.0
  %885 = vmatpush.msra.mxu0 0.0
  %886 = vmatpush.msra.mxu0 0.0
  %887 = vmatpush.msra.mxu0 0.0
  %888 = vmatpush.msra.mxu0 0.0
  %889 = vmatpush.msra.mxu0 0.0
  %890 = vmatpush.msra.mxu0 0.0
  %891 = vmatpush.msra.mxu0 0.0
  %892 = vmatpush.msra.mxu0 %v208
  %893 = vmatpush.msra.mxu0 %v65
  %894 = vmatpush.msra.mxu0 %v64
  %895 = vmatpush.msra.mxu0 %v63
  %896 = vmatmul.f32.gmra.mxu0 %v79
  %v897 = vpop.f32.mrf.mxu0
  %v898 = vadd.f32 %v845, %v897
  %899 = vmatmul.f32.gmra.mxu0 %v82
  %v900 = vpop.f32.mrf.mxu0
  %v901 = vadd.f32 %v848, %v900
  %902 = vmatmul.f32.gmra.mxu0 %v85
  %v903 = vpop.f32.mrf.mxu0
  %v904 = vadd.f32 %v851, %v903
  %905 = vmatmul.f32.gmra.mxu0 %v88
  %v906 = vpop.f32.mrf.mxu0
  %v907 = vadd.f32 %v854, %v906
  %908 = vmatmul.f32.gmra.mxu0 %v91
  %v909 = vpop.f32.mrf.mxu0
  %v910 = vadd.f32 %v857, %v909
  %911 = vmatmul.f32.gmra.mxu0 %v94
  %v912 = vpop.f32.mrf.mxu0
  %v913 = vadd.f32 %v860, %v912
  %914 = vmatmul.f32.gmra.mxu0 %v97
  %v915 = vpop.f32.mrf.mxu0
  %v916 = vadd.f32 %v863, %v915
  %917 = vmatmul.f32.gmra.mxu0 %v100
  %v918 = vpop.f32.mrf.mxu0
  %v919 = vadd.f32 %v866, %v918
  %920 = vmatmul.f32.gmra.mxu0 %v103
  %v921 = vpop.f32.mrf.mxu0
  %v922 = vadd.f32 %v869, %v921
  %923 = vmatmul.f32.gmra.mxu0 %v106
  %v924 = vpop.f32.mrf.mxu0
  %v925 = vadd.f32 %v872, %v924
  %926 = vmatmul.f32.gmra.mxu0 %v109
  %v927 = vpop.f32.mrf.mxu0
  %v928 = vadd.f32 %v875, %v927
  %929 = vmatmul.f32.gmra.mxu0 %v112
  %v930 = vpop.f32.mrf.mxu0
  %v931 = vadd.f32 %v878, %v930
  %932 = vdwg.mxu0
  %933 = vmatpush.msra.mxu0 0.0
  %934 = vmatpush.msra.mxu0 0.0
  %935 = vmatpush.msra.mxu0 0.0
  %936 = vmatpush.msra.mxu0 0.0
  %937 = vmatpush.msra.mxu0 0.0
  %938 = vmatpush.msra.mxu0 0.0
  %939 = vmatpush.msra.mxu0 0.0
  %940 = vmatpush.msra.mxu0 0.0
  %941 = vmatpush.msra.mxu0 0.0
  %942 = vmatpush.msra.mxu0 0.0
  %943 = vmatpush.msra.mxu0 0.0
  %944 = vmatpush.msra.mxu0 0.0
  %945 = vmatpush.msra.mxu0 %v269
  %946 = vmatpush.msra.mxu0 %v266
  %947 = vmatpush.msra.mxu0 %v265
  %948 = vmatpush.msra.mxu0 %v264
  %949 = vmatmul.f32.gmra.mxu0 %v175
  %v950 = vpop.f32.mrf.mxu0
  %v951 = vadd.f32 0.0, %v950
  %952 = vmatmul.f32.gmra.mxu0 %v178
  %v953 = vpop.f32.mrf.mxu0
  %v954 = vadd.f32 0.0, %v953
  %955 = vmatmul.f32.gmra.mxu0 %v181
  %v956 = vpop.f32.mrf.mxu0
  %v957 = vadd.f32 0.0, %v956
  %958 = vmatmul.f32.gmra.mxu0 %v184
  %v959 = vpop.f32.mrf.mxu0
  %v960 = vadd.f32 0.0, %v959
  %961 = vmatmul.f32.gmra.mxu0 %v187
  %v962 = vpop.f32.mrf.mxu0
  %v963 = vadd.f32 0.0, %v962
  %964 = vmatmul.f32.gmra.mxu0 %v190
  %v965 = vpop.f32.mrf.mxu0
  %v966 = vadd.f32 0.0, %v965
  %967 = vmatmul.f32.gmra.mxu0 %v193
  %v968 = vpop.f32.mrf.mxu0
  %v969 = vadd.f32 0.0, %v968
  %970 = vmatmul.f32.gmra.mxu0 %v196
  %v971 = vpop.f32.mrf.mxu0
  %v972 = vadd.f32 0.0, %v971
  %973 = vmatmul.f32.gmra.mxu0 %v199
  %v974 = vpop.f32.mrf.mxu0
  %v975 = vadd.f32 0.0, %v974
  %976 = vmatmul.f32.gmra.mxu0 %v202
  %v977 = vpop.f32.mrf.mxu0
  %v978 = vadd.f32 0.0, %v977
  %979 = vmatmul.f32.gmra.mxu0 %v205
  %v980 = vpop.f32.mrf.mxu0
  %v981 = vadd.f32 0.0, %v980
  %982 = vmatmul.f32.gmra.mxu0 %v386
  %v983 = vpop.f32.mrf.mxu0
  %v984 = vadd.f32 0.0, %v983
  %985 = vdwg.mxu0
  %986 = vmatpush.msra.mxu0 0.0
  %987 = vmatpush.msra.mxu0 0.0
  %988 = vmatpush.msra.mxu0 0.0
  %989 = vmatpush.msra.mxu0 0.0
  %990 = vmatpush.msra.mxu0 0.0
  %991 = vmatpush.msra.mxu0 0.0
  %992 = vmatpush.msra.mxu0 0.0
  %993 = vmatpush.msra.mxu0 0.0
  %994 = vmatpush.msra.mxu0 0.0
  %995 = vmatpush.msra.mxu0 0.0
  %996 = vmatpush.msra.mxu0 0.0
  %997 = vmatpush.msra.mxu0 0.0
  %998 = vmatpush.msra.mxu0 %v325
  %999 = vmatpush.msra.mxu0 %v70
  %1000 = vmatpush.msra.mxu0 %v69
  %1001 = vmatpush.msra.mxu0 %v68
  %1002 = vmatmul.f32.gmra.mxu0 %v79
  %v1003 = vpop.f32.mrf.mxu0
  %v1004 = vadd.f32 %v951, %v1003
  %1005 = vmatmul.f32.gmra.mxu0 %v82
  %v1006 = vpop.f32.mrf.mxu0
  %v1007 = vadd.f32 %v954, %v1006
  %1008 = vmatmul.f32.gmra.mxu0 %v85
  %v1009 = vpop.f32.mrf.mxu0
  %v1010 = vadd.f32 %v957, %v1009
  %1011 = vmatmul.f32.gmra.mxu0 %v88
  %v1012 = vpop.f32.mrf.mxu0
  %v1013 = vadd.f32 %v960, %v1012
  %1014 = vmatmul.f32.gmra.mxu0 %v91
  %v1015 = vpop.f32.mrf.mxu0
  %v1016 = vadd.f32 %v963, %v1015
  %1017 = vmatmul.f32.gmra.mxu0 %v94
  %v1018 = vpop.f32.mrf.mxu0
  %v1019 = vadd.f32 %v966, %v1018
  %1020 = vmatmul.f32.gmra.mxu0 %v97
  %v1021 = vpop.f32.mrf.mxu0
  %v1022 = vadd.f32 %v969, %v1021
  %1023 = vmatmul.f32.gmra.mxu0 %v100
  %v1024 = vpop.f32.mrf.mxu0
  %v1025 = vadd.f32 %v972, %v1024
  %1026 = vmatmul.f32.gmra.mxu0 %v103
  %v1027 = vpop.f32.mrf.mxu0
  %v1028 = vadd.f32 %v975, %v1027
  %1029 = vmatmul.f32.gmra.mxu0 %v106
  %v1030 = vpop.f32.mrf.mxu0
  %v1031 = vadd.f32 %v978, %v1030
  %1032 = vmatmul.f32.gmra.mxu0 %v109
  %v1033 = vpop.f32.mrf.mxu0
  %v1034 = vadd.f32 %v981, %v1033
  %1035 = vmatmul.f32.gmra.mxu0 %v112
  %v1036 = vpop.f32.mrf.mxu0
  %v1037 = vadd.f32 %v984, %v1036
  %1038 = vdwg.mxu0
  %1039 = vmatpush.msra.mxu0 0.0
  %1040 = vmatpush.msra.mxu0 0.0
  %1041 = vmatpush.msra.mxu0 0.0
  %1042 = vmatpush.msra.mxu0 0.0
  %1043 = vmatpush.msra.mxu0 0.0
  %1044 = vmatpush.msra.mxu0 0.0
  %1045 = vmatpush.msra.mxu0 0.0
  %1046 = vmatpush.msra.mxu0 0.0
  %1047 = vmatpush.msra.mxu0 0.0
  %1048 = vmatpush.msra.mxu0 0.0
  %1049 = vmatpush.msra.mxu0 0.0
  %1050 = vmatpush.msra.mxu0 0.0
  %1051 = vmatpush.msra.mxu0 %v389
  %1052 = vmatpush.msra.mxu0 %v383
  %1053 = vmatpush.msra.mxu0 %v382
  %1054 = vmatpush.msra.mxu0 %v381
  %1055 = vmatmul.f32.gmra.mxu0 %v82
  %v1056 = vpop.f32.mrf.mxu0
  %v1057 = vadd.f32 0.0, %v1056
  %1058 = vmatmul.f32.gmra.mxu0 %v85
  %v1059 = vpop.f32.mrf.mxu0
  %v1060 = vadd.f32 0.0, %v1059
  %1061 = vmatmul.f32.gmra.mxu0 %v88
  %v1062 = vpop.f32.mrf.mxu0
  %v1063 = vadd.f32 0.0, %v1062
  %1064 = vmatmul.f32.gmra.mxu0 %v91
  %v1065 = vpop.f32.mrf.mxu0
  %v1066 = vadd.f32 0.0, %v1065
  %1067 = vmatmul.f32.gmra.mxu0 %v94
  %v1068 = vpop.f32.mrf.mxu0
  %v1069 = vadd.f32 0.0, %v1068
  %1070 = vmatmul.f32.gmra.mxu0 %v97
  %v1071 = vpop.f32.mrf.mxu0
  %v1072 = vadd.f32 0.0, %v1071
  %1073 = vmatmul.f32.gmra.mxu0 %v100
  %v1074 = vpop.f32.mrf.mxu0
  %v1075 = vadd.f32 0.0, %v1074
  %1076 = vmatmul.f32.gmra.mxu0 %v103
  %v1077 = vpop.f32.mrf.mxu0
  %v1078 = vadd.f32 0.0, %v1077
  %1079 = vmatmul.f32.gmra.mxu0 %v106
  %v1080 = vpop.f32.mrf.mxu0
  %v1081 = vadd.f32 0.0, %v1080
  %1082 = vmatmul.f32.gmra.mxu0 %v109
  %v1083 = vpop.f32.mrf.mxu0
  %v1084 = vadd.f32 0.0, %v1083
  %1085 = vmatmul.f32.gmra.mxu0 %v112
  %v1086 = vpop.f32.mrf.mxu0
  %v1087 = vadd.f32 0.0, %v1086
  %1088 = vmatmul.f32.gmra.mxu0 %v535
  %v1089 = vpop.f32.mrf.mxu0
  %v1090 = vadd.f32 0.0, %v1089
  %1091 = vdwg.mxu0
  %v1092 = vadd.f32 %v898, %v1057
  %v1093 = vadd.f32 %v901, %v1060
  %v1094 = vadd.f32 %v904, %v1063
  %v1095 = vadd.f32 %v907, %v1066
  %v1096 = vadd.f32 %v910, %v1069
  %v1097 = vadd.f32 %v913, %v1072
  %v1098 = vadd.f32 %v916, %v1075
  %v1099 = vadd.f32 %v919, %v1078
  %v1100 = vadd.f32 %v922, %v1081
  %v1101 = vadd.f32 %v925, %v1084
  %v1102 = vadd.f32 %v928, %v1087
  %v1103 = vadd.f32 %v931, %v1090
  %1104 = vmatpush.msra.mxu0 0.0
  %1105 = vmatpush.msra.mxu0 0.0
  %1106 = vmatpush.msra.mxu0 0.0
  %1107 = vmatpush.msra.mxu0 0.0
  %1108 = vmatpush.msra.mxu0 0.0
  %1109 = vmatpush.msra.mxu0 0.0
  %1110 = vmatpush.msra.mxu0 0.0
  %1111 = vmatpush.msra.mxu0 0.0
  %1112 = vmatpush.msra.mxu0 0.0
  %1113 = vmatpush.msra.mxu0 0.0
  %1114 = vmatpush.msra.mxu0 0.0
  %1115 = vmatpush.msra.mxu0 0.0
  %1116 = vmatpush.msra.mxu0 %v462
  %1117 = vmatpush.msra.mxu0 %v459
  %1118 = vmatpush.msra.mxu0 %v458
  %1119 = vmatpush.msra.mxu0 %v457
  %1120 = vmatmul.f32.gmra.mxu0 %v82
  %v1121 = vpop.f32.mrf.mxu0
  %v1122 = vadd.f32 0.0, %v1121
  %1123 = vmatmul.f32.gmra.mxu0 %v85
  %v1124 = vpop.f32.mrf.mxu0
  %v1125 = vadd.f32 0.0, %v1124
  %1126 = vmatmul.f32.gmra.mxu0 %v88
  %v1127 = vpop.f32.mrf.mxu0
  %v1128 = vadd.f32 0.0, %v1127
  %1129 = vmatmul.f32.gmra.mxu0 %v91
  %v1130 = vpop.f32.mrf.mxu0
  %v1131 = vadd.f32 0.0, %v1130
  %1132 = vmatmul.f32.gmra.mxu0 %v94
  %v1133 = vpop.f32.mrf.mxu0
  %v1134 = vadd.f32 0.0, %v1133
  %1135 = vmatmul.f32.gmra.mxu0 %v97
  %v1136 = vpop.f32.mrf.mxu0
  %v1137 = vadd.f32 0.0, %v1136
  %1138 = vmatmul.f32.gmra.mxu0 %v100
  %v1139 = vpop.f32.mrf.mxu0
  %v1140 = vadd.f32 0.0, %v1139
  %1141 = vmatmul.f32.gmra.mxu0 %v103
  %v1142 = vpop.f32.mrf.mxu0
  %v1143 = vadd.f32 0.0, %v1142
  %1144 = vmatmul.f32.gmra.mxu0 %v106
  %v1145 = vpop.f32.mrf.mxu0
  %v1146 = vadd.f32 0.0, %v1145
  %1147 = vmatmul.f32.gmra.mxu0 %v109
  %v1148 = vpop.f32.mrf.mxu0
  %v1149 = vadd.f32 0.0, %v1148
  %1150 = vmatmul.f32.gmra.mxu0 %v112
  %v1151 = vpop.f32.mrf.mxu0
  %v1152 = vadd.f32 0.0, %v1151
  %1153 = vmatmul.f32.gmra.mxu0 %v535
  %v1154 = vpop.f32.mrf.mxu0
  %v1155 = vadd.f32 0.0, %v1154
  %1156 = vdwg.mxu0
  %v1157 = vadd.f32 %v1004, %v1122
  %v1158 = vadd.f32 %v1007, %v1125
  %v1159 = vadd.f32 %v1010, %v1128
  %v1160 = vadd.f32 %v1013, %v1131
  %v1161 = vadd.f32 %v1016, %v1134
  %v1162 = vadd.f32 %v1019, %v1137
  %v1163 = vadd.f32 %v1022, %v1140
  %v1164 = vadd.f32 %v1025, %v1143
  %v1165 = vadd.f32 %v1028, %v1146
  %v1166 = vadd.f32 %v1031, %v1149
  %v1167 = vadd.f32 %v1034, %v1152
  %v1168 = vadd.f32 %v1037, %v1155
  %1169 = vmatpush.msra.mxu0 0.0
  %1170 = vmatpush.msra.mxu0 0.0
  %1171 = vmatpush.msra.mxu0 0.0
  %1172 = vmatpush.msra.mxu0 0.0
  %1173 = vmatpush.msra.mxu0 0.0
  %1174 = vmatpush.msra.mxu0 0.0
  %1175 = vmatpush.msra.mxu0 0.0
  %1176 = vmatpush.msra.mxu0 0.0
  %1177 = vmatpush.msra.mxu0 0.0
  %1178 = vmatpush.msra.mxu0 0.0
  %1179 = vmatpush.msra.mxu0 0.0
  %1180 = vmatpush.msra.mxu0 0.0
  %1181 = vmatpush.msra.mxu0 %v538
  %1182 = vmatpush.msra.mxu0 %v532
  %1183 = vmatpush.msra.mxu0 %v531
  %1184 = vmatpush.msra.mxu0 %v530
  %1185 = vmatmul.f32.gmra.mxu0 %v178
  %v1186 = vpop.f32.mrf.mxu0
  %v1187 = vadd.f32 0.0, %v1186
  %1188 = vmatmul.f32.gmra.mxu0 %v181
  %v1189 = vpop.f32.mrf.mxu0
  %v1190 = vadd.f32 0.0, %v1189
  %1191 = vmatmul.f32.gmra.mxu0 %v184
  %v1192 = vpop.f32.mrf.mxu0
  %v1193 = vadd.f32 0.0, %v1192
  %1194 = vmatmul.f32.gmra.mxu0 %v187
  %v1195 = vpop.f32.mrf.mxu0
  %v1196 = vadd.f32 0.0, %v1195
  %1197 = vmatmul.f32.gmra.mxu0 %v190
  %v1198 = vpop.f32.mrf.mxu0
  %v1199 = vadd.f32 0.0, %v1198
  %1200 = vmatmul.f32.gmra.mxu0 %v193
  %v1201 = vpop.f32.mrf.mxu0
  %v1202 = vadd.f32 0.0, %v1201
  %1203 = vmatmul.f32.gmra.mxu0 %v196
  %v1204 = vpop.f32.mrf.mxu0
  %v1205 = vadd.f32 0.0, %v1204
  %1206 = vmatmul.f32.gmra.mxu0 %v199
  %v1207 = vpop.f32.mrf.mxu0
  %v1208 = vadd.f32 0.0, %v1207
  %1209 = vmatmul.f32.gmra.mxu0 %v202
  %v1210 = vpop.f32.mrf.mxu0
  %v1211 = vadd.f32 0.0, %v1210
  %1212 = vmatmul.f32.gmra.mxu0 %v205
  %v1213 = vpop.f32.mrf.mxu0
  %v1214 = vadd.f32 0.0, %v1213
  %1215 = vmatmul.f32.gmra.mxu0 %v386
  %v1216 = vpop.f32.mrf.mxu0
  %v1217 = vadd.f32 0.0, %v1216
  %1218 = vmatmul.f32.gmra.mxu0 %v684
  %v1219 = vpop.f32.mrf.mxu0
  %v1220 = vadd.f32 0.0, %v1219
  %1221 = vdwg.mxu0
  %v1222 = vadd.f32 %v1092, %v1187
  %v1223 = vadd.f32 %v1093, %v1190
  %v1224 = vadd.f32 %v1094, %v1193
  %v1225 = vadd.f32 %v1095, %v1196
  %v1226 = vadd.f32 %v1096, %v1199
  %v1227 = vadd.f32 %v1097, %v1202
  %v1228 = vadd.f32 %v1098, %v1205
  %v1229 = vadd.f32 %v1099, %v1208
  %v1230 = vadd.f32 %v1100, %v1211
  %v1231 = vadd.f32 %v1101, %v1214
  %v1232 = vadd.f32 %v1102, %v1217
  %v1233 = vadd.f32 %v1103, %v1220
  %1234 = vmatpush.msra.mxu0 0.0
  %1235 = vmatpush.msra.mxu0 0.0
  %1236 = vmatpush.msra.mxu0 0.0
  %1237 = vmatpush.msra.mxu0 0.0
  %1238 = vmatpush.msra.mxu0 0.0
  %1239 = vmatpush.msra.mxu0 0.0
  %1240 = vmatpush.msra.mxu0 0.0
  %1241 = vmatpush.msra.mxu0 0.0
  %1242 = vmatpush.msra.mxu0 0.0
  %1243 = vmatpush.msra.mxu0 0.0
  %1244 = vmatpush.msra.mxu0 0.0
  %1245 = vmatpush.msra.mxu0 0.0
  %1246 = vmatpush.msra.mxu0 %v611
  %1247 = vmatpush.msra.mxu0 %v608
  %1248 = vmatpush.msra.mxu0 %v607
  %1249 = vmatpush.msra.mxu0 %v606
  %1250 = vmatmul.f32.gmra.mxu0 %v178
  %v1251 = vpop.f32.mrf.mxu0
  %v1252 = vadd.f32 0.0, %v1251
  %1253 = vmatmul.f32.gmra.mxu0 %v181
  %v1254 = vpop.f32.mrf.mxu0
  %v1255 = vadd.f32 0.0, %v1254
  %1256 = vmatmul.f32.gmra.mxu0 %v184
  %v1257 = vpop.f32.mrf.mxu0
  %v1258 = vadd.f32 0.0, %v1257
  %1259 = vmatmul.f32.gmra.mxu0 %v187
  %v1260 = vpop.f32.mrf.mxu0
  %v1261 = vadd.f32 0.0, %v1260
  %1262 = vmatmul.f32.gmra.mxu0 %v190
  %v1263 = vpop.f32.mrf.mxu0
  %v1264 = vadd.f32 0.0, %v1263
  %1265 = vmatmul.f32.gmra.mxu0 %v193
  %v1266 = vpop.f32.mrf.mxu0
  %v1267 = vadd.f32 0.0, %v1266
  %1268 = vmatmul.f32.gmra.mxu0 %v196
  %v1269 = vpop.f32.mrf.mxu0
  %v1270 = vadd.f32 0.0, %v1269
  %1271 = vmatmul.f32.gmra.mxu0 %v199
  %v1272 = vpop.f32.mrf.mxu0
  %v1273 = vadd.f32 0.0, %v1272
  %1274 = vmatmul.f32.gmra.mxu0 %v202
  %v1275 = vpop.f32.mrf.mxu0
  %v1276 = vadd.f32 0.0, %v1275
  %1277 = vmatmul.f32.gmra.mxu0 %v205
  %v1278 = vpop.f32.mrf.mxu0
  %v1279 = vadd.f32 0.0, %v1278
  %1280 = vmatmul.f32.gmra.mxu0 %v386
  %v1281 = vpop.f32.mrf.mxu0
  %v1282 = vadd.f32 0.0, %v1281
  %1283 = vmatmul.f32.gmra.mxu0 %v684
  %v1284 = vpop.f32.mrf.mxu0
  %v1285 = vadd.f32 0.0, %v1284
  %1286 = vdwg.mxu0
  %v1287 = vadd.f32 %v1157, %v1252
  %v1288 = vadd.f32 %v1158, %v1255
  %v1289 = vadd.f32 %v1159, %v1258
  %v1290 = vadd.f32 %v1160, %v1261
  %v1291 = vadd.f32 %v1161, %v1264
  %v1292 = vadd.f32 %v1162, %v1267
  %v1293 = vadd.f32 %v1163, %v1270
  %v1294 = vadd.f32 %v1164, %v1273
  %v1295 = vadd.f32 %v1165, %v1276
  %v1296 = vadd.f32 %v1166, %v1279
  %v1297 = vadd.f32 %v1167, %v1282
  %v1298 = vadd.f32 %v1168, %v1285
  %v1300 = vsel %vm77, %v62, 0
  %1302 = vmatpush.msra.mxu0 0.0
  %1303 = vmatpush.msra.mxu0 0.0
  %1304 = vmatpush.msra.mxu0 0.0
  %1305 = vmatpush.msra.mxu0 0.0
  %1306 = vmatpush.msra.mxu0 0.0
  %1307 = vmatpush.msra.mxu0 0.0
  %1308 = vmatpush.msra.mxu0 0.0
  %1309 = vmatpush.msra.mxu0 0.0
  %1310 = vmatpush.msra.mxu0 0.0
  %1311 = vmatpush.msra.mxu0 0.0
  %1312 = vmatpush.msra.mxu0 0.0
  %1313 = vmatpush.msra.mxu0 0.0
  %1314 = vmatpush.msra.mxu0 %v687
  %1315 = vmatpush.msra.mxu0 %v681
  %1316 = vmatpush.msra.mxu0 %v680
  %1317 = vmatpush.msra.mxu0 %v679
  %1318 = vmatmul.f32.gmra.mxu0 %v85
  %v1319 = vpop.f32.mrf.mxu0
  %v1320 = vadd.f32 0.0, %v1319
  %1321 = vmatmul.f32.gmra.mxu0 %v88
  %v1322 = vpop.f32.mrf.mxu0
  %v1323 = vadd.f32 0.0, %v1322
  %1324 = vmatmul.f32.gmra.mxu0 %v91
  %v1325 = vpop.f32.mrf.mxu0
  %v1326 = vadd.f32 0.0, %v1325
  %1327 = vmatmul.f32.gmra.mxu0 %v94
  %v1328 = vpop.f32.mrf.mxu0
  %v1329 = vadd.f32 0.0, %v1328
  %1330 = vmatmul.f32.gmra.mxu0 %v97
  %v1331 = vpop.f32.mrf.mxu0
  %v1332 = vadd.f32 0.0, %v1331
  %1333 = vmatmul.f32.gmra.mxu0 %v100
  %v1334 = vpop.f32.mrf.mxu0
  %v1335 = vadd.f32 0.0, %v1334
  %1336 = vmatmul.f32.gmra.mxu0 %v103
  %v1337 = vpop.f32.mrf.mxu0
  %v1338 = vadd.f32 0.0, %v1337
  %1339 = vmatmul.f32.gmra.mxu0 %v106
  %v1340 = vpop.f32.mrf.mxu0
  %v1341 = vadd.f32 0.0, %v1340
  %1342 = vmatmul.f32.gmra.mxu0 %v109
  %v1343 = vpop.f32.mrf.mxu0
  %v1344 = vadd.f32 0.0, %v1343
  %1345 = vmatmul.f32.gmra.mxu0 %v112
  %v1346 = vpop.f32.mrf.mxu0
  %v1347 = vadd.f32 0.0, %v1346
  %1348 = vmatmul.f32.gmra.mxu0 %v535
  %v1349 = vpop.f32.mrf.mxu0
  %v1350 = vadd.f32 0.0, %v1349
  %1351 = vmatmul.f32.gmra.mxu0 %v1300
  %v1352 = vpop.f32.mrf.mxu0
  %v1353 = vadd.f32 0.0, %v1352
  %1354 = vdwg.mxu0
  %v1355 = vadd.f32 %v1222, %v1320
  %v1356 = vadd.f32 %v1223, %v1323
  %v1357 = vadd.f32 %v1224, %v1326
  %v1358 = vadd.f32 %v1225, %v1329
  %v1359 = vadd.f32 %v1226, %v1332
  %v1360 = vadd.f32 %v1227, %v1335
  %v1361 = vadd.f32 %v1228, %v1338
  %v1362 = vadd.f32 %v1229, %v1341
  %v1363 = vadd.f32 %v1230, %v1344
  %v1364 = vadd.f32 %v1231, %v1347
  %v1365 = vadd.f32 %v1232, %v1350
  %v1366 = vadd.f32 %v1233, %v1353
  %1367 = vmatpush.msra.mxu0 0.0
  %1368 = vmatpush.msra.mxu0 0.0
  %1369 = vmatpush.msra.mxu0 0.0
  %1370 = vmatpush.msra.mxu0 0.0
  %1371 = vmatpush.msra.mxu0 0.0
  %1372 = vmatpush.msra.mxu0 0.0
  %1373 = vmatpush.msra.mxu0 0.0
  %1374 = vmatpush.msra.mxu0 0.0
  %1375 = vmatpush.msra.mxu0 0.0
  %1376 = vmatpush.msra.mxu0 0.0
  %1377 = vmatpush.msra.mxu0 0.0
  %1378 = vmatpush.msra.mxu0 0.0
  %1379 = vmatpush.msra.mxu0 %v760
  %1380 = vmatpush.msra.mxu0 %v757
  %1381 = vmatpush.msra.mxu0 %v756
  %1382 = vmatpush.msra.mxu0 %v755
  %1383 = vmatmul.f32.gmra.mxu0 %v85
  %v1384 = vpop.f32.mrf.mxu0
  %v1385 = vadd.f32 0.0, %v1384
  %1386 = vmatmul.f32.gmra.mxu0 %v88
  %v1387 = vpop.f32.mrf.mxu0
  %v1388 = vadd.f32 0.0, %v1387
  %1389 = vmatmul.f32.gmra.mxu0 %v91
  %v1390 = vpop.f32.mrf.mxu0
  %v1391 = vadd.f32 0.0, %v1390
  %1392 = vmatmul.f32.gmra.mxu0 %v94
  %v1393 = vpop.f32.mrf.mxu0
  %v1394 = vadd.f32 0.0, %v1393
  %1395 = vmatmul.f32.gmra.mxu0 %v97
  %v1396 = vpop.f32.mrf.mxu0
  %v1397 = vadd.f32 0.0, %v1396
  %1398 = vmatmul.f32.gmra.mxu0 %v100
  %v1399 = vpop.f32.mrf.mxu0
  %v1400 = vadd.f32 0.0, %v1399
  %1401 = vmatmul.f32.gmra.mxu0 %v103
  %v1402 = vpop.f32.mrf.mxu0
  %v1403 = vadd.f32 0.0, %v1402
  %1404 = vmatmul.f32.gmra.mxu0 %v106
  %v1405 = vpop.f32.mrf.mxu0
  %v1406 = vadd.f32 0.0, %v1405
  %1407 = vmatmul.f32.gmra.mxu0 %v109
  %v1408 = vpop.f32.mrf.mxu0
  %v1409 = vadd.f32 0.0, %v1408
  %1410 = vmatmul.f32.gmra.mxu0 %v112
  %v1411 = vpop.f32.mrf.mxu0
  %v1412 = vadd.f32 0.0, %v1411
  %1413 = vmatmul.f32.gmra.mxu0 %v535
  %v1414 = vpop.f32.mrf.mxu0
  %v1415 = vadd.f32 0.0, %v1414
  %1416 = vmatmul.f32.gmra.mxu0 %v1300
  %v1417 = vpop.f32.mrf.mxu0
  %v1418 = vadd.f32 0.0, %v1417
  %1419 = vdwg.mxu0
  %v1420 = vadd.f32 %v1287, %v1385
  %v1421 = vadd.f32 %v1288, %v1388
  %v1422 = vadd.f32 %v1289, %v1391
  %v1423 = vadd.f32 %v1290, %v1394
  %v1424 = vadd.f32 %v1291, %v1397
  %v1425 = vadd.f32 %v1292, %v1400
  %v1426 = vadd.f32 %v1293, %v1403
  %v1427 = vadd.f32 %v1294, %v1406
  %v1428 = vadd.f32 %v1295, %v1409
  %v1429 = vadd.f32 %v1296, %v1412
  %v1430 = vadd.f32 %v1297, %v1415
  %v1431 = vadd.f32 %v1298, %v1418
  %v1432 = vmax.f32 %v742, %v815
  %v1433 = vmax.f32 %v743, %v816
  %v1434 = vmax.f32 %v744, %v817
  %v1435 = vmax.f32 %v745, %v818
  %v1436 = vmax.f32 %v746, %v819
  %v1437 = vmax.f32 %v747, %v820
  %v1438 = vmax.f32 %v748, %v821
  %v1439 = vmax.f32 %v749, %v822
  %v1440 = vmax.f32 %v750, %v823
  %v1441 = vmax.f32 %v751, %v824
  %v1442 = vmax.f32 %v752, %v825
  %v1443 = vmax.f32 %v753, %v826
  %v1444 = vmax.f32 %v1355, %v1420
  %v1445 = vmax.f32 %v1356, %v1421
  %v1446 = vmax.f32 %v1357, %v1422
  %v1447 = vmax.f32 %v1358, %v1423
  %v1448 = vmax.f32 %v1359, %v1424
  %v1449 = vmax.f32 %v1360, %v1425
  %v1450 = vmax.f32 %v1361, %v1426
  %v1451 = vmax.f32 %v1362, %v1427
  %v1452 = vmax.f32 %v1363, %v1428
  %v1453 = vmax.f32 %v1364, %v1429
  %v1454 = vmax.f32 %v1365, %v1430
  %v1455 = vmax.f32 %v1366, %v1431
  %v1456 = vmax.f32 %v1432, %v1444
  %v1457 = vmax.f32 %v1433, %v1445
  %v1458 = vmax.f32 %v1434, %v1446
  %v1459 = vmax.f32 %v1435, %v1447
  %v1460 = vmax.f32 %v1436, %v1448
  %v1461 = vmax.f32 %v1437, %v1449
  %v1462 = vmax.f32 %v1438, %v1450
  %v1463 = vmax.f32 %v1439, %v1451
  %v1464 = vmax.f32 %v1440, %v1452
  %v1465 = vmax.f32 %v1441, %v1453
  %v1466 = vmax.f32 %v1442, %v1454
  %v1467 = vmax.f32 %v1443, %v1455
  %v1468 = vld [vmem:[%s3] sm:$0x1]
  %v1470 = vperm.slane %v1468, 0
  %v1472 = vadd.f32 %v1456, %v1470
  %v1473 = vadd.f32 %v1457, %v1470
  %v1474 = vadd.f32 %v1458, %v1470
  %v1475 = vadd.f32 %v1459, %v1470
  %v1476 = vadd.f32 %v1460, %v1470
  %v1477 = vadd.f32 %v1461, %v1470
  %v1478 = vadd.f32 %v1462, %v1470
  %v1479 = vadd.f32 %v1463, %v1470
  %v1480 = vadd.f32 %v1464, %v1470
  %v1481 = vadd.f32 %v1465, %v1470
  %v1482 = vadd.f32 %v1466, %v1470
  %v1483 = vadd.f32 %v1467, %v1470
  %v1484 = vmax.f32 %v1472, 0.0
  %v1485 = vmax.f32 %v1473, 0.0
  %v1486 = vmax.f32 %v1474, 0.0
  %v1487 = vmax.f32 %v1475, 0.0
  %v1488 = vmax.f32 %v1476, 0.0
  %v1489 = vmax.f32 %v1477, 0.0
  %v1490 = vmax.f32 %v1478, 0.0
  %v1491 = vmax.f32 %v1479, 0.0
  %v1492 = vmax.f32 %v1480, 0.0
  %v1493 = vmax.f32 %v1481, 0.0
  %v1494 = vmax.f32 %v1482, 0.0
  %v1495 = vmax.f32 %v1483, 0.0
  %v1496 = vld [vmem:[%s4] sm:$0xff]
  %v1497 = vld [vmem:[%s4 + $0x8] sm:$0xff]
  %v1498 = vld [vmem:[%s4 + $0x10] sm:$0xff]
  %v1499 = vld [vmem:[%s4 + $0x18] sm:$0xff]
  %v1500 = vld [vmem:[%s4 + $0x20] sm:$0xff]
  %v1501 = vld [vmem:[%s4 + $0x28] sm:$0xff]
  %v1502 = vld [vmem:[%s4 + $0x30] sm:$0xff]
  %v1503 = vld [vmem:[%s4 + $0x38] sm:$0xff]
  %v1504 = vld [vmem:[%s4 + $0x40] sm:$0xff]
  %v1505 = vld [vmem:[%s4 + $0x48] sm:$0xff]
  %v1506 = vld [vmem:[%s4 + $0x50] sm:$0xff]
  %v1507 = vld [vmem:[%s4 + $0x58] sm:$0xff]
  %v1508 = vld [vmem:[%s4 + $0x60] sm:$0xff]
  %v1509 = vld [vmem:[%s4 + $0x68] sm:$0xff]
  %v1510 = vld [vmem:[%s4 + $0x70] sm:$0xff]
  %s1511 = scalar_lea.vmem %s4, 120
  %v1512 = vld [vmem:[%s1511] sm:$0xff]
  %v1513 = vld [vmem:[%s1511 + $0x8] sm:$0xff]
  %v1514 = vld [vmem:[%s1511 + $0x10] sm:$0xff]
  %v1515 = vld [vmem:[%s1511 + $0x18] sm:$0xff]
  %v1516 = vld [vmem:[%s1511 + $0x20] sm:$0xff]
  %v1517 = vld [vmem:[%s1511 + $0x28] sm:$0xff]
  %v1518 = vld [vmem:[%s1511 + $0x30] sm:$0xff]
  %v1519 = vld [vmem:[%s1511 + $0x38] sm:$0xff]
  %v1520 = vld [vmem:[%s1511 + $0x40] sm:$0xff]
  %v1521 = vld [vmem:[%s1511 + $0x48] sm:$0xff]
  %v1522 = vld [vmem:[%s1511 + $0x50] sm:$0xff]
  %v1523 = vld [vmem:[%s1511 + $0x58] sm:$0xff]
  %v1524 = vld [vmem:[%s1511 + $0x60] sm:$0xff]
  %v1525 = vld [vmem:[%s1511 + $0x68] sm:$0xff]
  %v1526 = vld [vmem:[%s1511 + $0x70] sm:$0xff]
  %s1527 = scalar_lea.vmem %s4, 240
  %v1528 = vld [vmem:[%s1527] sm:$0xff]
  %v1529 = vld [vmem:[%s1527 + $0x8] sm:$0xff]
  %v1530 = vld [vmem:[%s1527 + $0x10] sm:$0xff]
  %v1531 = vld [vmem:[%s1527 + $0x18] sm:$0xff]
  %v1532 = vld [vmem:[%s1527 + $0x20] sm:$0xff]
  %v1533 = vld [vmem:[%s1527 + $0x28] sm:$0xff]
  %v1534 = vld [vmem:[%s1527 + $0x30] sm:$0xff]
  %v1535 = vld [vmem:[%s1527 + $0x38] sm:$0xff]
  %v1536 = vld [vmem:[%s1527 + $0x40] sm:$0xff]
  %v1537 = vld [vmem:[%s1527 + $0x48] sm:$0xff]
  %v1538 = vld [vmem:[%s1527 + $0x50] sm:$0xff]
  %v1539 = vld [vmem:[%s1527 + $0x58] sm:$0xff]
  %v1540 = vld [vmem:[%s1527 + $0x60] sm:$0xff]
  %v1541 = vld [vmem:[%s1527 + $0x68] sm:$0xff]
  %v1542 = vld [vmem:[%s1527 + $0x70] sm:$0xff]
  %vm1543 = vcmask 982016
  %v1545 = vsel %vm1543, %v1485, 0
  %v1548 = vsel %vm1543, %v1486, 0
  %v1551 = vsel %vm1543, %v1487, 0
  %v1554 = vsel %vm1543, %v1488, 0
  %v1557 = vsel %vm1543, %v1489, 0
  %v1560 = vsel %vm1543, %v1490, 0
  %v1563 = vsel %vm1543, %v1491, 0
  %v1566 = vsel %vm1543, %v1492, 0
  %1568 = vmatpush.msra.mxu0 0.0
  %1569 = vmatpush.msra.mxu0 %v1542
  %1570 = vmatpush.msra.mxu0 %v1541
  %1571 = vmatpush.msra.mxu0 %v1540
  %1572 = vmatpush.msra.mxu0 %v1539
  %1573 = vmatpush.msra.mxu0 %v1538
  %1574 = vmatpush.msra.mxu0 %v1537
  %1575 = vmatpush.msra.mxu0 %v1536
  %1576 = vmatpush.msra.mxu0 %v1535
  %1577 = vmatpush.msra.mxu0 %v1534
  %1578 = vmatpush.msra.mxu0 %v1533
  %1579 = vmatpush.msra.mxu0 %v1532
  %1580 = vmatpush.msra.mxu0 %v1531
  %1581 = vmatpush.msra.mxu0 %v1530
  %1582 = vmatpush.msra.mxu0 %v1529
  %1583 = vmatpush.msra.mxu0 %v1528
  %1584 = vmatmul.f32.gmra.mxu0 %v1545
  %v1585 = vpop.f32.mrf.mxu0
  %v1586 = vadd.f32 0.0, %v1585
  %1587 = vmatmul.f32.gmra.mxu0 %v1548
  %v1588 = vpop.f32.mrf.mxu0
  %v1589 = vadd.f32 0.0, %v1588
  %1590 = vmatmul.f32.gmra.mxu0 %v1551
  %v1591 = vpop.f32.mrf.mxu0
  %v1592 = vadd.f32 0.0, %v1591
  %1593 = vmatmul.f32.gmra.mxu0 %v1554
  %v1594 = vpop.f32.mrf.mxu0
  %v1595 = vadd.f32 0.0, %v1594
  %1596 = vmatmul.f32.gmra.mxu0 %v1557
  %v1597 = vpop.f32.mrf.mxu0
  %v1598 = vadd.f32 0.0, %v1597
  %1599 = vmatmul.f32.gmra.mxu0 %v1560
  %v1600 = vpop.f32.mrf.mxu0
  %v1601 = vadd.f32 0.0, %v1600
  %1602 = vmatmul.f32.gmra.mxu0 %v1563
  %v1603 = vpop.f32.mrf.mxu0
  %v1604 = vadd.f32 0.0, %v1603
  %1605 = vmatmul.f32.gmra.mxu0 %v1566
  %v1606 = vpop.f32.mrf.mxu0
  %v1607 = vadd.f32 0.0, %v1606
  %1608 = vdwg.mxu0
  %s1609 = scalar_lea.vmem %s4, 360
  %v1610 = vld [vmem:[%s1609] sm:$0xff]
  %v1611 = vld [vmem:[%s1609 + $0x8] sm:$0xff]
  %v1612 = vld [vmem:[%s1609 + $0x10] sm:$0xff]
  %v1613 = vld [vmem:[%s1609 + $0x18] sm:$0xff]
  %v1614 = vld [vmem:[%s1609 + $0x20] sm:$0xff]
  %v1615 = vld [vmem:[%s1609 + $0x28] sm:$0xff]
  %v1616 = vld [vmem:[%s1609 + $0x30] sm:$0xff]
  %v1617 = vld [vmem:[%s1609 + $0x38] sm:$0xff]
  %v1618 = vld [vmem:[%s1609 + $0x40] sm:$0xff]
  %v1619 = vld [vmem:[%s1609 + $0x48] sm:$0xff]
  %v1620 = vld [vmem:[%s1609 + $0x50] sm:$0xff]
  %v1621 = vld [vmem:[%s1609 + $0x58] sm:$0xff]
  %v1622 = vld [vmem:[%s1609 + $0x60] sm:$0xff]
  %v1623 = vld [vmem:[%s1609 + $0x68] sm:$0xff]
  %v1624 = vld [vmem:[%s1609 + $0x70] sm:$0xff]
  %1625 = vmatpush.msra.mxu0 0.0
  %1626 = vmatpush.msra.mxu0 %v1624
  %1627 = vmatpush.msra.mxu0 %v1623
  %1628 = vmatpush.msra.mxu0 %v1622
  %1629 = vmatpush.msra.mxu0 %v1621
  %1630 = vmatpush.msra.mxu0 %v1620
  %1631 = vmatpush.msra.mxu0 %v1619
  %1632 = vmatpush.msra.mxu0 %v1618
  %1633 = vmatpush.msra.mxu0 %v1617
  %1634 = vmatpush.msra.mxu0 %v1616
  %1635 = vmatpush.msra.mxu0 %v1615
  %1636 = vmatpush.msra.mxu0 %v1614
  %1637 = vmatpush.msra.mxu0 %v1613
  %1638 = vmatpush.msra.mxu0 %v1612
  %1639 = vmatpush.msra.mxu0 %v1611
  %1640 = vmatpush.msra.mxu0 %v1610
  %1641 = vmatmul.f32.gmra.mxu0 %v1545
  %v1642 = vpop.f32.mrf.mxu0
  %v1643 = vadd.f32 0.0, %v1642
  %1644 = vmatmul.f32.gmra.mxu0 %v1548
  %v1645 = vpop.f32.mrf.mxu0
  %v1646 = vadd.f32 0.0, %v1645
  %1647 = vmatmul.f32.gmra.mxu0 %v1551
  %v1648 = vpop.f32.mrf.mxu0
  %v1649 = vadd.f32 0.0, %v1648
  %1650 = vmatmul.f32.gmra.mxu0 %v1554
  %v1651 = vpop.f32.mrf.mxu0
  %v1652 = vadd.f32 0.0, %v1651
  %1653 = vmatmul.f32.gmra.mxu0 %v1557
  %v1654 = vpop.f32.mrf.mxu0
  %v1655 = vadd.f32 0.0, %v1654
  %1656 = vmatmul.f32.gmra.mxu0 %v1560
  %v1657 = vpop.f32.mrf.mxu0
  %v1658 = vadd.f32 0.0, %v1657
  %1659 = vmatmul.f32.gmra.mxu0 %v1563
  %v1660 = vpop.f32.mrf.mxu0
  %v1661 = vadd.f32 0.0, %v1660
  %1662 = vmatmul.f32.gmra.mxu0 %v1566
  %v1663 = vpop.f32.mrf.mxu0
  %v1664 = vadd.f32 0.0, %v1663
  %1665 = vdwg.mxu0
  %v1667 = vsel %vm1543, %v1484, 0
  %1669 = vmatpush.msra.mxu0 0.0
  %1670 = vmatpush.msra.mxu0 %v1510
  %1671 = vmatpush.msra.mxu0 %v1509
  %1672 = vmatpush.msra.mxu0 %v1508
  %1673 = vmatpush.msra.mxu0 %v1507
  %1674 = vmatpush.msra.mxu0 %v1506
  %1675 = vmatpush.msra.mxu0 %v1505
  %1676 = vmatpush.msra.mxu0 %v1504
  %1677 = vmatpush.msra.mxu0 %v1503
  %1678 = vmatpush.msra.mxu0 %v1502
  %1679 = vmatpush.msra.mxu0 %v1501
  %1680 = vmatpush.msra.mxu0 %v1500
  %1681 = vmatpush.msra.mxu0 %v1499
  %1682 = vmatpush.msra.mxu0 %v1498
  %1683 = vmatpush.msra.mxu0 %v1497
  %1684 = vmatpush.msra.mxu0 %v1496
  %1685 = vmatmul.f32.gmra.mxu0 %v1667
  %v1686 = vpop.f32.mrf.mxu0
  %v1687 = vadd.f32 %v1586, %v1686
  %1688 = vmatmul.f32.gmra.mxu0 %v1545
  %v1689 = vpop.f32.mrf.mxu0
  %v1690 = vadd.f32 %v1589, %v1689
  %1691 = vmatmul.f32.gmra.mxu0 %v1548
  %v1692 = vpop.f32.mrf.mxu0
  %v1693 = vadd.f32 %v1592, %v1692
  %1694 = vmatmul.f32.gmra.mxu0 %v1551
  %v1695 = vpop.f32.mrf.mxu0
  %v1696 = vadd.f32 %v1595, %v1695
  %1697 = vmatmul.f32.gmra.mxu0 %v1554
  %v1698 = vpop.f32.mrf.mxu0
  %v1699 = vadd.f32 %v1598, %v1698
  %1700 = vmatmul.f32.gmra.mxu0 %v1557
  %v1701 = vpop.f32.mrf.mxu0
  %v1702 = vadd.f32 %v1601, %v1701
  %1703 = vmatmul.f32.gmra.mxu0 %v1560
  %v1704 = vpop.f32.mrf.mxu0
  %v1705 = vadd.f32 %v1604, %v1704
  %1706 = vmatmul.f32.gmra.mxu0 %v1563
  %v1707 = vpop.f32.mrf.mxu0
  %v1708 = vadd.f32 %v1607, %v1707
  %1709 = vdwg.mxu0
  %1710 = vmatpush.msra.mxu0 0.0
  %1711 = vmatpush.msra.mxu0 %v1526
  %1712 = vmatpush.msra.mxu0 %v1525
  %1713 = vmatpush.msra.mxu0 %v1524
  %1714 = vmatpush.msra.mxu0 %v1523
  %1715 = vmatpush.msra.mxu0 %v1522
  %1716 = vmatpush.msra.mxu0 %v1521
  %1717 = vmatpush.msra.mxu0 %v1520
  %1718 = vmatpush.msra.mxu0 %v1519
  %1719 = vmatpush.msra.mxu0 %v1518
  %1720 = vmatpush.msra.mxu0 %v1517
  %1721 = vmatpush.msra.mxu0 %v1516
  %1722 = vmatpush.msra.mxu0 %v1515
  %1723 = vmatpush.msra.mxu0 %v1514
  %1724 = vmatpush.msra.mxu0 %v1513
  %1725 = vmatpush.msra.mxu0 %v1512
  %1726 = vmatmul.f32.gmra.mxu0 %v1667
  %v1727 = vpop.f32.mrf.mxu0
  %v1728 = vadd.f32 %v1643, %v1727
  %1729 = vmatmul.f32.gmra.mxu0 %v1545
  %v1730 = vpop.f32.mrf.mxu0
  %v1731 = vadd.f32 %v1646, %v1730
  %1732 = vmatmul.f32.gmra.mxu0 %v1548
  %v1733 = vpop.f32.mrf.mxu0
  %v1734 = vadd.f32 %v1649, %v1733
  %1735 = vmatmul.f32.gmra.mxu0 %v1551
  %v1736 = vpop.f32.mrf.mxu0
  %v1737 = vadd.f32 %v1652, %v1736
  %1738 = vmatmul.f32.gmra.mxu0 %v1554
  %v1739 = vpop.f32.mrf.mxu0
  %v1740 = vadd.f32 %v1655, %v1739
  %1741 = vmatmul.f32.gmra.mxu0 %v1557
  %v1742 = vpop.f32.mrf.mxu0
  %v1743 = vadd.f32 %v1658, %v1742
  %1744 = vmatmul.f32.gmra.mxu0 %v1560
  %v1745 = vpop.f32.mrf.mxu0
  %v1746 = vadd.f32 %v1661, %v1745
  %1747 = vmatmul.f32.gmra.mxu0 %v1563
  %v1748 = vpop.f32.mrf.mxu0
  %v1749 = vadd.f32 %v1664, %v1748
  %1750 = vdwg.mxu0
  %s1751 = scalar_lea.vmem %s4, 480
  %v1752 = vld [vmem:[%s1751] sm:$0xff]
  %v1753 = vld [vmem:[%s1751 + $0x8] sm:$0xff]
  %v1754 = vld [vmem:[%s1751 + $0x10] sm:$0xff]
  %v1755 = vld [vmem:[%s1751 + $0x18] sm:$0xff]
  %v1756 = vld [vmem:[%s1751 + $0x20] sm:$0xff]
  %v1757 = vld [vmem:[%s1751 + $0x28] sm:$0xff]
  %v1758 = vld [vmem:[%s1751 + $0x30] sm:$0xff]
  %v1759 = vld [vmem:[%s1751 + $0x38] sm:$0xff]
  %v1760 = vld [vmem:[%s1751 + $0x40] sm:$0xff]
  %v1761 = vld [vmem:[%s1751 + $0x48] sm:$0xff]
  %v1762 = vld [vmem:[%s1751 + $0x50] sm:$0xff]
  %v1763 = vld [vmem:[%s1751 + $0x58] sm:$0xff]
  %v1764 = vld [vmem:[%s1751 + $0x60] sm:$0xff]
  %v1765 = vld [vmem:[%s1751 + $0x68] sm:$0xff]
  %v1766 = vld [vmem:[%s1751 + $0x70] sm:$0xff]
  %v1768 = vsel %vm1543, %v1493, 0
  %1770 = vmatpush.msra.mxu0 0.0
  %1771 = vmatpush.msra.mxu0 %v1766
  %1772 = vmatpush.msra.mxu0 %v1765
  %1773 = vmatpush.msra.mxu0 %v1764
  %1774 = vmatpush.msra.mxu0 %v1763
  %1775 = vmatpush.msra.mxu0 %v1762
  %1776 = vmatpush.msra.mxu0 %v1761
  %1777 = vmatpush.msra.mxu0 %v1760
  %1778 = vmatpush.msra.mxu0 %v1759
  %1779 = vmatpush.msra.mxu0 %v1758
  %1780 = vmatpush.msra.mxu0 %v1757
  %1781 = vmatpush.msra.mxu0 %v1756
  %1782 = vmatpush.msra.mxu0 %v1755
  %1783 = vmatpush.msra.mxu0 %v1754
  %1784 = vmatpush.msra.mxu0 %v1753
  %1785 = vmatpush.msra.mxu0 %v1752
  %1786 = vmatmul.f32.gmra.mxu0 %v1548
  %v1787 = vpop.f32.mrf.mxu0
  %v1788 = vadd.f32 0.0, %v1787
  %1789 = vmatmul.f32.gmra.mxu0 %v1551
  %v1790 = vpop.f32.mrf.mxu0
  %v1791 = vadd.f32 0.0, %v1790
  %1792 = vmatmul.f32.gmra.mxu0 %v1554
  %v1793 = vpop.f32.mrf.mxu0
  %v1794 = vadd.f32 0.0, %v1793
  %1795 = vmatmul.f32.gmra.mxu0 %v1557
  %v1796 = vpop.f32.mrf.mxu0
  %v1797 = vadd.f32 0.0, %v1796
  %1798 = vmatmul.f32.gmra.mxu0 %v1560
  %v1799 = vpop.f32.mrf.mxu0
  %v1800 = vadd.f32 0.0, %v1799
  %1801 = vmatmul.f32.gmra.mxu0 %v1563
  %v1802 = vpop.f32.mrf.mxu0
  %v1803 = vadd.f32 0.0, %v1802
  %1804 = vmatmul.f32.gmra.mxu0 %v1566
  %v1805 = vpop.f32.mrf.mxu0
  %v1806 = vadd.f32 0.0, %v1805
  %1807 = vmatmul.f32.gmra.mxu0 %v1768
  %v1808 = vpop.f32.mrf.mxu0
  %v1809 = vadd.f32 0.0, %v1808
  %1810 = vdwg.mxu0
  %s1811 = scalar_lea.vmem %s4, 600
  %v1812 = vld [vmem:[%s1811] sm:$0xff]
  %v1813 = vld [vmem:[%s1811 + $0x8] sm:$0xff]
  %v1814 = vld [vmem:[%s1811 + $0x10] sm:$0xff]
  %v1815 = vld [vmem:[%s1811 + $0x18] sm:$0xff]
  %v1816 = vld [vmem:[%s1811 + $0x20] sm:$0xff]
  %v1817 = vld [vmem:[%s1811 + $0x28] sm:$0xff]
  %v1818 = vld [vmem:[%s1811 + $0x30] sm:$0xff]
  %v1819 = vld [vmem:[%s1811 + $0x38] sm:$0xff]
  %v1820 = vld [vmem:[%s1811 + $0x40] sm:$0xff]
  %v1821 = vld [vmem:[%s1811 + $0x48] sm:$0xff]
  %v1822 = vld [vmem:[%s1811 + $0x50] sm:$0xff]
  %v1823 = vld [vmem:[%s1811 + $0x58] sm:$0xff]
  %v1824 = vld [vmem:[%s1811 + $0x60] sm:$0xff]
  %v1825 = vld [vmem:[%s1811 + $0x68] sm:$0xff]
  %v1826 = vld [vmem:[%s1811 + $0x70] sm:$0xff]
  %1827 = vmatpush.msra.mxu0 0.0
  %1828 = vmatpush.msra.mxu0 %v1826
  %1829 = vmatpush.msra.mxu0 %v1825
  %1830 = vmatpush.msra.mxu0 %v1824
  %1831 = vmatpush.msra.mxu0 %v1823
  %1832 = vmatpush.msra.mxu0 %v1822
  %1833 = vmatpush.msra.mxu0 %v1821
  %1834 = vmatpush.msra.mxu0 %v1820
  %1835 = vmatpush.msra.mxu0 %v1819
  %1836 = vmatpush.msra.mxu0 %v1818
  %1837 = vmatpush.msra.mxu0 %v1817
  %1838 = vmatpush.msra.mxu0 %v1816
  %1839 = vmatpush.msra.mxu0 %v1815
  %1840 = vmatpush.msra.mxu0 %v1814
  %1841 = vmatpush.msra.mxu0 %v1813
  %1842 = vmatpush.msra.mxu0 %v1812
  %1843 = vmatmul.f32.gmra.mxu0 %v1548
  %v1844 = vpop.f32.mrf.mxu0
  %v1845 = vadd.f32 0.0, %v1844
  %1846 = vmatmul.f32.gmra.mxu0 %v1551
  %v1847 = vpop.f32.mrf.mxu0
  %v1848 = vadd.f32 0.0, %v1847
  %1849 = vmatmul.f32.gmra.mxu0 %v1554
  %v1850 = vpop.f32.mrf.mxu0
  %v1851 = vadd.f32 0.0, %v1850
  %1852 = vmatmul.f32.gmra.mxu0 %v1557
  %v1853 = vpop.f32.mrf.mxu0
  %v1854 = vadd.f32 0.0, %v1853
  %1855 = vmatmul.f32.gmra.mxu0 %v1560
  %v1856 = vpop.f32.mrf.mxu0
  %v1857 = vadd.f32 0.0, %v1856
  %1858 = vmatmul.f32.gmra.mxu0 %v1563
  %v1859 = vpop.f32.mrf.mxu0
  %v1860 = vadd.f32 0.0, %v1859
  %1861 = vmatmul.f32.gmra.mxu0 %v1566
  %v1862 = vpop.f32.mrf.mxu0
  %v1863 = vadd.f32 0.0, %v1862
  %1864 = vmatmul.f32.gmra.mxu0 %v1768
  %v1865 = vpop.f32.mrf.mxu0
  %v1866 = vadd.f32 0.0, %v1865
  %1867 = vdwg.mxu0
  %v1868 = vadd.f32 %v1687, %v1788
  %v1869 = vadd.f32 %v1690, %v1791
  %v1870 = vadd.f32 %v1693, %v1794
  %v1871 = vadd.f32 %v1696, %v1797
  %v1872 = vadd.f32 %v1699, %v1800
  %v1873 = vadd.f32 %v1702, %v1803
  %v1874 = vadd.f32 %v1705, %v1806
  %v1875 = vadd.f32 %v1708, %v1809
  %v1876 = vadd.f32 %v1728, %v1845
  %v1877 = vadd.f32 %v1731, %v1848
  %v1878 = vadd.f32 %v1734, %v1851
  %v1879 = vadd.f32 %v1737, %v1854
  %v1880 = vadd.f32 %v1740, %v1857
  %v1881 = vadd.f32 %v1743, %v1860
  %v1882 = vadd.f32 %v1746, %v1863
  %v1883 = vadd.f32 %v1749, %v1866
  %s1884 = scalar_lea.vmem %s4, 720
  %v1885 = vld [vmem:[%s1884] sm:$0xff]
  %v1886 = vld [vmem:[%s1884 + $0x8] sm:$0xff]
  %v1887 = vld [vmem:[%s1884 + $0x10] sm:$0xff]
  %v1888 = vld [vmem:[%s1884 + $0x18] sm:$0xff]
  %v1889 = vld [vmem:[%s1884 + $0x20] sm:$0xff]
  %v1890 = vld [vmem:[%s1884 + $0x28] sm:$0xff]
  %v1891 = vld [vmem:[%s1884 + $0x30] sm:$0xff]
  %v1892 = vld [vmem:[%s1884 + $0x38] sm:$0xff]
  %v1893 = vld [vmem:[%s1884 + $0x40] sm:$0xff]
  %v1894 = vld [vmem:[%s1884 + $0x48] sm:$0xff]
  %v1895 = vld [vmem:[%s1884 + $0x50] sm:$0xff]
  %v1896 = vld [vmem:[%s1884 + $0x58] sm:$0xff]
  %v1897 = vld [vmem:[%s1884 + $0x60] sm:$0xff]
  %v1898 = vld [vmem:[%s1884 + $0x68] sm:$0xff]
  %v1899 = vld [vmem:[%s1884 + $0x70] sm:$0xff]
  %v1901 = vsel %vm1543, %v1494, 0
  %1903 = vmatpush.msra.mxu0 0.0
  %1904 = vmatpush.msra.mxu0 %v1899
  %1905 = vmatpush.msra.mxu0 %v1898
  %1906 = vmatpush.msra.mxu0 %v1897
  %1907 = vmatpush.msra.mxu0 %v1896
  %1908 = vmatpush.msra.mxu0 %v1895
  %1909 = vmatpush.msra.mxu0 %v1894
  %1910 = vmatpush.msra.mxu0 %v1893
  %1911 = vmatpush.msra.mxu0 %v1892
  %1912 = vmatpush.msra.mxu0 %v1891
  %1913 = vmatpush.msra.mxu0 %v1890
  %1914 = vmatpush.msra.mxu0 %v1889
  %1915 = vmatpush.msra.mxu0 %v1888
  %1916 = vmatpush.msra.mxu0 %v1887
  %1917 = vmatpush.msra.mxu0 %v1886
  %1918 = vmatpush.msra.mxu0 %v1885
  %1919 = vmatmul.f32.gmra.mxu0 %v1551
  %v1920 = vpop.f32.mrf.mxu0
  %v1921 = vadd.f32 0.0, %v1920
  %1922 = vmatmul.f32.gmra.mxu0 %v1554
  %v1923 = vpop.f32.mrf.mxu0
  %v1924 = vadd.f32 0.0, %v1923
  %1925 = vmatmul.f32.gmra.mxu0 %v1557
  %v1926 = vpop.f32.mrf.mxu0
  %v1927 = vadd.f32 0.0, %v1926
  %1928 = vmatmul.f32.gmra.mxu0 %v1560
  %v1929 = vpop.f32.mrf.mxu0
  %v1930 = vadd.f32 0.0, %v1929
  %1931 = vmatmul.f32.gmra.mxu0 %v1563
  %v1932 = vpop.f32.mrf.mxu0
  %v1933 = vadd.f32 0.0, %v1932
  %1934 = vmatmul.f32.gmra.mxu0 %v1566
  %v1935 = vpop.f32.mrf.mxu0
  %v1936 = vadd.f32 0.0, %v1935
  %1937 = vmatmul.f32.gmra.mxu0 %v1768
  %v1938 = vpop.f32.mrf.mxu0
  %v1939 = vadd.f32 0.0, %v1938
  %1940 = vmatmul.f32.gmra.mxu0 %v1901
  %v1941 = vpop.f32.mrf.mxu0
  %v1942 = vadd.f32 0.0, %v1941
  %1943 = vdwg.mxu0
  %s1944 = scalar_lea.vmem %s4, 840
  %v1945 = vld [vmem:[%s1944] sm:$0xff]
  %v1946 = vld [vmem:[%s1944 + $0x8] sm:$0xff]
  %v1947 = vld [vmem:[%s1944 + $0x10] sm:$0xff]
  %v1948 = vld [vmem:[%s1944 + $0x18] sm:$0xff]
  %v1949 = vld [vmem:[%s1944 + $0x20] sm:$0xff]
  %v1950 = vld [vmem:[%s1944 + $0x28] sm:$0xff]
  %v1951 = vld [vmem:[%s1944 + $0x30] sm:$0xff]
  %v1952 = vld [vmem:[%s1944 + $0x38] sm:$0xff]
  %v1953 = vld [vmem:[%s1944 + $0x40] sm:$0xff]
  %v1954 = vld [vmem:[%s1944 + $0x48] sm:$0xff]
  %v1955 = vld [vmem:[%s1944 + $0x50] sm:$0xff]
  %v1956 = vld [vmem:[%s1944 + $0x58] sm:$0xff]
  %v1957 = vld [vmem:[%s1944 + $0x60] sm:$0xff]
  %v1958 = vld [vmem:[%s1944 + $0x68] sm:$0xff]
  %v1959 = vld [vmem:[%s1944 + $0x70] sm:$0xff]
  %1960 = vmatpush.msra.mxu0 0.0
  %1961 = vmatpush.msra.mxu0 %v1959
  %1962 = vmatpush.msra.mxu0 %v1958
  %1963 = vmatpush.msra.mxu0 %v1957
  %1964 = vmatpush.msra.mxu0 %v1956
  %1965 = vmatpush.msra.mxu0 %v1955
  %1966 = vmatpush.msra.mxu0 %v1954
  %1967 = vmatpush.msra.mxu0 %v1953
  %1968 = vmatpush.msra.mxu0 %v1952
  %1969 = vmatpush.msra.mxu0 %v1951
  %1970 = vmatpush.msra.mxu0 %v1950
  %1971 = vmatpush.msra.mxu0 %v1949
  %1972 = vmatpush.msra.mxu0 %v1948
  %1973 = vmatpush.msra.mxu0 %v1947
  %1974 = vmatpush.msra.mxu0 %v1946
  %1975 = vmatpush.msra.mxu0 %v1945
  %1976 = vmatmul.f32.gmra.mxu0 %v1551
  %v1977 = vpop.f32.mrf.mxu0
  %v1978 = vadd.f32 0.0, %v1977
  %1979 = vmatmul.f32.gmra.mxu0 %v1554
  %v1980 = vpop.f32.mrf.mxu0
  %v1981 = vadd.f32 0.0, %v1980
  %1982 = vmatmul.f32.gmra.mxu0 %v1557
  %v1983 = vpop.f32.mrf.mxu0
  %v1984 = vadd.f32 0.0, %v1983
  %1985 = vmatmul.f32.gmra.mxu0 %v1560
  %v1986 = vpop.f32.mrf.mxu0
  %v1987 = vadd.f32 0.0, %v1986
  %1988 = vmatmul.f32.gmra.mxu0 %v1563
  %v1989 = vpop.f32.mrf.mxu0
  %v1990 = vadd.f32 0.0, %v1989
  %1991 = vmatmul.f32.gmra.mxu0 %v1566
  %v1992 = vpop.f32.mrf.mxu0
  %v1993 = vadd.f32 0.0, %v1992
  %1994 = vmatmul.f32.gmra.mxu0 %v1768
  %v1995 = vpop.f32.mrf.mxu0
  %v1996 = vadd.f32 0.0, %v1995
  %1997 = vmatmul.f32.gmra.mxu0 %v1901
  %v1998 = vpop.f32.mrf.mxu0
  %v1999 = vadd.f32 0.0, %v1998
  %2000 = vdwg.mxu0
  %v2001 = vadd.f32 %v1868, %v1921
  %v2002 = vadd.f32 %v1869, %v1924
  %v2003 = vadd.f32 %v1870, %v1927
  %v2004 = vadd.f32 %v1871, %v1930
  %v2005 = vadd.f32 %v1872, %v1933
  %v2006 = vadd.f32 %v1873, %v1936
  %v2007 = vadd.f32 %v1874, %v1939
  %v2008 = vadd.f32 %v1875, %v1942
  %v2009 = vadd.f32 %v1876, %v1978
  %v2010 = vadd.f32 %v1877, %v1981
  %v2011 = vadd.f32 %v1878, %v1984
  %v2012 = vadd.f32 %v1879, %v1987
  %v2013 = vadd.f32 %v1880, %v1990
  %v2014 = vadd.f32 %v1881, %v1993
  %v2015 = vadd.f32 %v1882, %v1996
  %v2016 = vadd.f32 %v1883, %v1999
  %s2017 = scalar_lea.vmem %s4, 960
  %v2018 = vld [vmem:[%s2017] sm:$0xff]
  %v2019 = vld [vmem:[%s2017 + $0x8] sm:$0xff]
  %v2020 = vld [vmem:[%s2017 + $0x10] sm:$0xff]
  %v2021 = vld [vmem:[%s2017 + $0x18] sm:$0xff]
  %v2022 = vld [vmem:[%s2017 + $0x20] sm:$0xff]
  %v2023 = vld [vmem:[%s2017 + $0x28] sm:$0xff]
  %v2024 = vld [vmem:[%s2017 + $0x30] sm:$0xff]
  %v2025 = vld [vmem:[%s2017 + $0x38] sm:$0xff]
  %v2026 = vld [vmem:[%s2017 + $0x40] sm:$0xff]
  %v2027 = vld [vmem:[%s2017 + $0x48] sm:$0xff]
  %v2028 = vld [vmem:[%s2017 + $0x50] sm:$0xff]
  %v2029 = vld [vmem:[%s2017 + $0x58] sm:$0xff]
  %v2030 = vld [vmem:[%s2017 + $0x60] sm:$0xff]
  %v2031 = vld [vmem:[%s2017 + $0x68] sm:$0xff]
  %v2032 = vld [vmem:[%s2017 + $0x70] sm:$0xff]
  %v2034 = vsel %vm1543, %v1495, 0
  %2036 = vmatpush.msra.mxu0 0.0
  %2037 = vmatpush.msra.mxu0 %v2032
  %2038 = vmatpush.msra.mxu0 %v2031
  %2039 = vmatpush.msra.mxu0 %v2030
  %2040 = vmatpush.msra.mxu0 %v2029
  %2041 = vmatpush.msra.mxu0 %v2028
  %2042 = vmatpush.msra.mxu0 %v2027
  %2043 = vmatpush.msra.mxu0 %v2026
  %2044 = vmatpush.msra.mxu0 %v2025
  %2045 = vmatpush.msra.mxu0 %v2024
  %2046 = vmatpush.msra.mxu0 %v2023
  %2047 = vmatpush.msra.mxu0 %v2022
  %2048 = vmatpush.msra.mxu0 %v2021
  %2049 = vmatpush.msra.mxu0 %v2020
  %2050 = vmatpush.msra.mxu0 %v2019
  %2051 = vmatpush.msra.mxu0 %v2018
  %2052 = vmatmul.f32.gmra.mxu0 %v1554
  %v2053 = vpop.f32.mrf.mxu0
  %v2054 = vadd.f32 0.0, %v2053
  %2055 = vmatmul.f32.gmra.mxu0 %v1557
  %v2056 = vpop.f32.mrf.mxu0
  %v2057 = vadd.f32 0.0, %v2056
  %2058 = vmatmul.f32.gmra.mxu0 %v1560
  %v2059 = vpop.f32.mrf.mxu0
  %v2060 = vadd.f32 0.0, %v2059
  %2061 = vmatmul.f32.gmra.mxu0 %v1563
  %v2062 = vpop.f32.mrf.mxu0
  %v2063 = vadd.f32 0.0, %v2062
  %2064 = vmatmul.f32.gmra.mxu0 %v1566
  %v2065 = vpop.f32.mrf.mxu0
  %v2066 = vadd.f32 0.0, %v2065
  %2067 = vmatmul.f32.gmra.mxu0 %v1768
  %v2068 = vpop.f32.mrf.mxu0
  %v2069 = vadd.f32 0.0, %v2068
  %2070 = vmatmul.f32.gmra.mxu0 %v1901
  %v2071 = vpop.f32.mrf.mxu0
  %v2072 = vadd.f32 0.0, %v2071
  %2073 = vmatmul.f32.gmra.mxu0 %v2034
  %v2074 = vpop.f32.mrf.mxu0
  %v2075 = vadd.f32 0.0, %v2074
  %2076 = vdwg.mxu0
  %s2077 = scalar_lea.vmem %s4, 1080
  %v2078 = vld [vmem:[%s2077] sm:$0xff]
  %v2079 = vld [vmem:[%s2077 + $0x8] sm:$0xff]
  %v2080 = vld [vmem:[%s2077 + $0x10] sm:$0xff]
  %v2081 = vld [vmem:[%s2077 + $0x18] sm:$0xff]
  %v2082 = vld [vmem:[%s2077 + $0x20] sm:$0xff]
  %v2083 = vld [vmem:[%s2077 + $0x28] sm:$0xff]
  %v2084 = vld [vmem:[%s2077 + $0x30] sm:$0xff]
  %v2085 = vld [vmem:[%s2077 + $0x38] sm:$0xff]
  %v2086 = vld [vmem:[%s2077 + $0x40] sm:$0xff]
  %v2087 = vld [vmem:[%s2077 + $0x48] sm:$0xff]
  %v2088 = vld [vmem:[%s2077 + $0x50] sm:$0xff]
  %v2089 = vld [vmem:[%s2077 + $0x58] sm:$0xff]
  %v2090 = vld [vmem:[%s2077 + $0x60] sm:$0xff]
  %v2091 = vld [vmem:[%s2077 + $0x68] sm:$0xff]
  %v2092 = vld [vmem:[%s2077 + $0x70] sm:$0xff]
  %2093 = vmatpush.msra.mxu0 0.0
  %2094 = vmatpush.msra.mxu0 %v2092
  %2095 = vmatpush.msra.mxu0 %v2091
  %2096 = vmatpush.msra.mxu0 %v2090
  %2097 = vmatpush.msra.mxu0 %v2089
  %2098 = vmatpush.msra.mxu0 %v2088
  %2099 = vmatpush.msra.mxu0 %v2087
  %2100 = vmatpush.msra.mxu0 %v2086
  %2101 = vmatpush.msra.mxu0 %v2085
  %2102 = vmatpush.msra.mxu0 %v2084
  %2103 = vmatpush.msra.mxu0 %v2083
  %2104 = vmatpush.msra.mxu0 %v2082
  %2105 = vmatpush.msra.mxu0 %v2081
  %2106 = vmatpush.msra.mxu0 %v2080
  %2107 = vmatpush.msra.mxu0 %v2079
  %2108 = vmatpush.msra.mxu0 %v2078
  %2109 = vmatmul.f32.gmra.mxu0 %v1554
  %v2110 = vpop.f32.mrf.mxu0
  %v2111 = vadd.f32 0.0, %v2110
  %2112 = vmatmul.f32.gmra.mxu0 %v1557
  %v2113 = vpop.f32.mrf.mxu0
  %v2114 = vadd.f32 0.0, %v2113
  %2115 = vmatmul.f32.gmra.mxu0 %v1560
  %v2116 = vpop.f32.mrf.mxu0
  %v2117 = vadd.f32 0.0, %v2116
  %2118 = vmatmul.f32.gmra.mxu0 %v1563
  %v2119 = vpop.f32.mrf.mxu0
  %v2120 = vadd.f32 0.0, %v2119
  %2121 = vmatmul.f32.gmra.mxu0 %v1566
  %v2122 = vpop.f32.mrf.mxu0
  %v2123 = vadd.f32 0.0, %v2122
  %2124 = vmatmul.f32.gmra.mxu0 %v1768
  %v2125 = vpop.f32.mrf.mxu0
  %v2126 = vadd.f32 0.0, %v2125
  %2127 = vmatmul.f32.gmra.mxu0 %v1901
  %v2128 = vpop.f32.mrf.mxu0
  %v2129 = vadd.f32 0.0, %v2128
  %2130 = vmatmul.f32.gmra.mxu0 %v2034
  %v2131 = vpop.f32.mrf.mxu0
  %v2132 = vadd.f32 0.0, %v2131
  %2133 = vdwg.mxu0
  %v2134 = vadd.f32 %v2001, %v2054
  %v2135 = vadd.f32 %v2002, %v2057
  %v2136 = vadd.f32 %v2003, %v2060
  %v2137 = vadd.f32 %v2004, %v2063
  %v2138 = vadd.f32 %v2005, %v2066
  %v2139 = vadd.f32 %v2006, %v2069
  %v2140 = vadd.f32 %v2007, %v2072
  %v2141 = vadd.f32 %v2008, %v2075
  %v2142 = vadd.f32 %v2009, %v2111
  %v2143 = vadd.f32 %v2010, %v2114
  %v2144 = vadd.f32 %v2011, %v2117
  %v2145 = vadd.f32 %v2012, %v2120
  %v2146 = vadd.f32 %v2013, %v2123
  %v2147 = vadd.f32 %v2014, %v2126
  %v2148 = vadd.f32 %v2015, %v2129
  %v2149 = vadd.f32 %v2016, %v2132
  %v2150 = vmax.f32 %v2134, %v2135
  %v2151 = vmax.f32 %v2142, %v2143
  %v2152 = vmax.f32 %v2150, %v2151
  %v2153 = vld [vmem:[%s5] sm:$0x1]
  %v2155 = vperm.slane %v2153, 0
  %v2157 = vadd.f32 %v2152, %v2155
  %v2158 = vmax.f32 %v2157, 0.0
  %v2159 = vld [vmem:[%s6] sm:$0xff]
  %v2160 = vld [vmem:[%s6 + $0x8] sm:$0xff]
  %v2161 = vld [vmem:[%s6 + $0x10] sm:$0xff]
  %v2162 = vld [vmem:[%s6 + $0x18] sm:$0xff]
  %v2163 = vld [vmem:[%s6 + $0x20] sm:$0xff]
  %v2164 = vld [vmem:[%s6 + $0x28] sm:$0xff]
  %v2165 = vld [vmem:[%s6 + $0x30] sm:$0xff]
  %v2166 = vld [vmem:[%s6 + $0x38] sm:$0xff]
  %v2167 = vld [vmem:[%s6 + $0x40] sm:$0xff]
  %v2168 = vld [vmem:[%s6 + $0x48] sm:$0xff]
  %v2169 = vmax.f32 %v2136, %v2137
  %v2170 = vmax.f32 %v2144, %v2145
  %v2171 = vmax.f32 %v2169, %v2170
  %v2172 = vadd.f32 %v2171, %v2155
  %v2173 = vmax.f32 %v2172, 0.0
  %s2174 = scalar_lea.vmem %s6, 80
  %v2175 = vld [vmem:[%s2174] sm:$0xff]
  %v2176 = vld [vmem:[%s2174 + $0x8] sm:$0xff]
  %v2177 = vld [vmem:[%s2174 + $0x10] sm:$0xff]
  %v2178 = vld [vmem:[%s2174 + $0x18] sm:$0xff]
  %v2179 = vld [vmem:[%s2174 + $0x20] sm:$0xff]
  %v2180 = vld [vmem:[%s2174 + $0x28] sm:$0xff]
  %v2181 = vld [vmem:[%s2174 + $0x30] sm:$0xff]
  %v2182 = vld [vmem:[%s2174 + $0x38] sm:$0xff]
  %v2183 = vld [vmem:[%s2174 + $0x40] sm:$0xff]
  %v2184 = vld [vmem:[%s2174 + $0x48] sm:$0xff]
  %vm2185 = vcmask 654336
  %v2187 = vsel %vm2185, %v2173, 0
  %2189 = vmatpush.msra.mxu0 0.0
  %2190 = vmatpush.msra.mxu0 0.0
  %2191 = vmatpush.msra.mxu0 0.0
  %2192 = vmatpush.msra.mxu0 0.0
  %2193 = vmatpush.msra.mxu0 0.0
  %2194 = vmatpush.msra.mxu0 0.0
  %2195 = vmatpush.msra.mxu0 %v2184
  %2196 = vmatpush.msra.mxu0 %v2183
  %2197 = vmatpush.msra.mxu0 %v2182
  %2198 = vmatpush.msra.mxu0 %v2181
  %2199 = vmatpush.msra.mxu0 %v2180
  %2200 = vmatpush.msra.mxu0 %v2179
  %2201 = vmatpush.msra.mxu0 %v2178
  %2202 = vmatpush.msra.mxu0 %v2177
  %2203 = vmatpush.msra.mxu0 %v2176
  %2204 = vmatpush.msra.mxu0 %v2175
  %2205 = vmatmul.f32.gmra.mxu0 %v2187
  %v2206 = vpop.f32.mrf.mxu0
  %v2207 = vadd.f32 0.0, %v2206
  %2208 = vdwg.mxu0
  %v2210 = vsel %vm2185, %v2158, 0
  %2212 = vmatpush.msra.mxu0 0.0
  %2213 = vmatpush.msra.mxu0 0.0
  %2214 = vmatpush.msra.mxu0 0.0
  %2215 = vmatpush.msra.mxu0 0.0
  %2216 = vmatpush.msra.mxu0 0.0
  %2217 = vmatpush.msra.mxu0 0.0
  %2218 = vmatpush.msra.mxu0 %v2168
  %2219 = vmatpush.msra.mxu0 %v2167
  %2220 = vmatpush.msra.mxu0 %v2166
  %2221 = vmatpush.msra.mxu0 %v2165
  %2222 = vmatpush.msra.mxu0 %v2164
  %2223 = vmatpush.msra.mxu0 %v2163
  %2224 = vmatpush.msra.mxu0 %v2162
  %2225 = vmatpush.msra.mxu0 %v2161
  %2226 = vmatpush.msra.mxu0 %v2160
  %2227 = vmatpush.msra.mxu0 %v2159
  %2228 = vmatmul.f32.gmra.mxu0 %v2210
  %v2229 = vpop.f32.mrf.mxu0
  %v2230 = vadd.f32 %v2207, %v2229
  %2231 = vdwg.mxu0
  %v2232 = vmax.f32 %v2138, %v2139
  %v2233 = vmax.f32 %v2146, %v2147
  %v2234 = vmax.f32 %v2232, %v2233
  %v2235 = vadd.f32 %v2234, %v2155
  %v2236 = vmax.f32 %v2235, 0.0
  %s2237 = scalar_lea.vmem %s6, 160
  %v2238 = vld [vmem:[%s2237] sm:$0xff]
  %v2239 = vld [vmem:[%s2237 + $0x8] sm:$0xff]
  %v2240 = vld [vmem:[%s2237 + $0x10] sm:$0xff]
  %v2241 = vld [vmem:[%s2237 + $0x18] sm:$0xff]
  %v2242 = vld [vmem:[%s2237 + $0x20] sm:$0xff]
  %v2243 = vld [vmem:[%s2237 + $0x28] sm:$0xff]
  %v2244 = vld [vmem:[%s2237 + $0x30] sm:$0xff]
  %v2245 = vld [vmem:[%s2237 + $0x38] sm:$0xff]
  %v2246 = vld [vmem:[%s2237 + $0x40] sm:$0xff]
  %v2247 = vld [vmem:[%s2237 + $0x48] sm:$0xff]
  %v2249 = vsel %vm2185, %v2236, 0
  %2251 = vmatpush.msra.mxu0 0.0
  %2252 = vmatpush.msra.mxu0 0.0
  %2253 = vmatpush.msra.mxu0 0.0
  %2254 = vmatpush.msra.mxu0 0.0
  %2255 = vmatpush.msra.mxu0 0.0
  %2256 = vmatpush.msra.mxu0 0.0
  %2257 = vmatpush.msra.mxu0 %v2247
  %2258 = vmatpush.msra.mxu0 %v2246
  %2259 = vmatpush.msra.mxu0 %v2245
  %2260 = vmatpush.msra.mxu0 %v2244
  %2261 = vmatpush.msra.mxu0 %v2243
  %2262 = vmatpush.msra.mxu0 %v2242
  %2263 = vmatpush.msra.mxu0 %v2241
  %2264 = vmatpush.msra.mxu0 %v2240
  %2265 = vmatpush.msra.mxu0 %v2239
  %2266 = vmatpush.msra.mxu0 %v2238
  %2267 = vmatmul.f32.gmra.mxu0 %v2249
  %v2268 = vpop.f32.mrf.mxu0
  %v2269 = vadd.f32 0.0, %v2268
  %2270 = vdwg.mxu0
  %v2271 = vadd.f32 %v2230, %v2269
  %v2272 = vmax.f32 %v2140, %v2141
  %v2273 = vmax.f32 %v2148, %v2149
  %v2274 = vmax.f32 %v2272, %v2273
  %v2275 = vadd.f32 %v2274, %v2155
  %v2276 = vmax.f32 %v2275, 0.0
  %s2277 = scalar_lea.vmem %s6, 240
  %v2278 = vld [vmem:[%s2277] sm:$0xff]
  %v2279 = vld [vmem:[%s2277 + $0x8] sm:$0xff]
  %v2280 = vld [vmem:[%s2277 + $0x10] sm:$0xff]
  %v2281 = vld [vmem:[%s2277 + $0x18] sm:$0xff]
  %v2282 = vld [vmem:[%s2277 + $0x20] sm:$0xff]
  %v2283 = vld [vmem:[%s2277 + $0x28] sm:$0xff]
  %v2284 = vld [vmem:[%s2277 + $0x30] sm:$0xff]
  %v2285 = vld [vmem:[%s2277 + $0x38] sm:$0xff]
  %v2286 = vld [vmem:[%s2277 + $0x40] sm:$0xff]
  %v2287 = vld [vmem:[%s2277 + $0x48] sm:$0xff]
  %v2289 = vsel %vm2185, %v2276, 0
  %2291 = vmatpush.msra.mxu0 0.0
  %2292 = vmatpush.msra.mxu0 0.0
  %2293 = vmatpush.msra.mxu0 0.0
  %2294 = vmatpush.msra.mxu0 0.0
  %2295 = vmatpush.msra.mxu0 0.0
  %2296 = vmatpush.msra.mxu0 0.0
  %2297 = vmatpush.msra.mxu0 %v2287
  %2298 = vmatpush.msra.mxu0 %v2286
  %2299 = vmatpush.msra.mxu0 %v2285
  %2300 = vmatpush.msra.mxu0 %v2284
  %2301 = vmatpush.msra.mxu0 %v2283
  %2302 = vmatpush.msra.mxu0 %v2282
  %2303 = vmatpush.msra.mxu0 %v2281
  %2304 = vmatpush.msra.mxu0 %v2280
  %2305 = vmatpush.msra.mxu0 %v2279
  %2306 = vmatpush.msra.mxu0 %v2278
  %2307 = vmatmul.f32.gmra.mxu0 %v2289
  %v2308 = vpop.f32.mrf.mxu0
  %v2309 = vadd.f32 0.0, %v2308
  %2310 = vdwg.mxu0
  %v2311 = vadd.f32 %v2271, %v2309
  %v2312 = vld [vmem:[%s7] sm:$0x1]
  %v2314 = vperm.slane %v2312, 0
  %v2316 = vadd.f32 %v2311, %v2314
  %v2317 = vmax.f32 %v2316, 0.0
  %v2318 = vld [vmem:[%s8] sm:$0xff]
  %v2319 = vld [vmem:[%s8 + $0x8] sm:$0xff]
  %v2320 = vld [vmem:[%s8 + $0x10] sm:$0xff]
  %v2321 = vld [vmem:[%s8 + $0x18] sm:$0xff]
  %v2322 = vld [vmem:[%s8 + $0x20] sm:$0xff]
  %v2323 = vld [vmem:[%s8 + $0x28] sm:$0xff]
  %v2324 = vld [vmem:[%s8 + $0x30] sm:$0x3]
  %v2325 = vld [vmem:[%s9] sm:$0x1]
  %v2327 = vperm.slane %v2325, 0
  %vm2329 = vcmask 408576
  %v2331 = vsel %vm2329, %v2317, 0
  %vm2333 = vcmask 1041408
  %v2335 = vsel %vm2333, %v2324, 0
  %2337 = vmatpush.msra.mxu0 0.0
  %2338 = vmatpush.msra.mxu0 0.0
  %2339 = vmatpush.msra.mxu0 0.0
  %2340 = vmatpush.msra.mxu0 0.0
  %2341 = vmatpush.msra.mxu0 0.0
  %2342 = vmatpush.msra.mxu0 0.0
  %2343 = vmatpush.msra.mxu0 0.0
  %2344 = vmatpush.msra.mxu0 0.0
  %2345 = vmatpush.msra.mxu0 0.0
  %2346 = vmatpush.msra.mxu0 %v2335
  %2347 = vmatpush.msra.mxu0 %v2323
  %2348 = vmatpush.msra.mxu0 %v2322
  %2349 = vmatpush.msra.mxu0 %v2321
  %2350 = vmatpush.msra.mxu0 %v2320
  %2351 = vmatpush.msra.mxu0 %v2319
  %2352 = vmatpush.msra.mxu0 %v2318
  %2353 = vmatmul.f32.gmra.mxu0 %v2331
  %v2354 = vpop.f32.mrf.mxu0
  %v2355 = vadd.f32 %v2327, %v2354
  %2356 = vdwg.mxu0
  %vm2357 = vcmask 80896
  %v2358 = vsel %vm2357, %v2355, -inf
  %2359 = vmax.xlane.f32.xlu0 %v2358
  %v2360 = vpop.xlane.xlu0 %2359
  %v2361 = vsub.f32 %v2355, %v2360
  %v2362 = vmul.f32 %v2361, 1.442695
  %v2363 = vpow.pop %v2362
  %v2364 = vsel %vm2357, %v2363, 0.0
  %2365 = vadd.xlane.f32.xlu0 %v2364
  %v2366 = vpop.xlane.xlu0 %2365
  %v2367 = vrcp.pop %v2366
  %v2368 = vmul.f32 %v2366, %v2367
  %v2369 = vsub.f32 1.0, %v2368
  %v2370 = vmul.f32 %v2367, %v2369
  %v2371 = vadd.f32 %v2367, %v2370
  %vm2372 = vweird.f32 %v2366
  %vm2373 = vweird.f32 %v2367
  %vm2374 = vmor %vm2372, %vm2373
  %v2375 = vsel %vm2374, %v2367, %v2371
  %v2376 = vand.u32 2147483647, %v2366
  %vm2377 = vcmp.eq.f32.partialorder %v2376, 8.507059e+37
  %v2378 = vand.u32 %v2366, 2147483648
  %v2379 = vor.u32 1.1754944e-38, %v2378
  %v2380 = vsel %vm2377, %v2379, %v2375
  %v2381 = vmul.f32 %v2363, %v2380
  %2382 = vst.msk [vmem:[%s10] sm:$0xff] %vm2357, %v2381
  // Predicated region
  $region42: #{net_forward.1} parent=0 // pred_check
    _
  $region43: #{net_forward.1} parent=0 // pred_check_branch
    %2384 = sbr.rel (0) target = $region45
  $region44: #{net_forward.1} parent=0 // pred_region
    _
  $region45: #{net_forward.1} parent=0 // pred_fallthru
    _
  // Predicated region
  $region46: #{net_forward.1} parent=0 // pred_check
    _
  $region47: #{net_forward.1} parent=0 // pred_check_branch
    %2386 = sbr.rel (0) target = $region49
  $region48: #{net_forward.1} parent=0 // pred_region
    _
  $region49: #{net_forward.1} parent=0 // pred_fallthru
    _

</llo_original>
